<compile_context>
chip_gen: v7x
topology: tpu7x:2x2x1
jax: 0.10.0
libtpu: 0.0.40
codegen_flags: <defaults>
</compile_context>

<pallas_src>
import functools

import jax
import jax.numpy as jnp
from jax.experimental import pallas as pl
from jax.experimental.pallas import tpu as pltpu


def _vanilla_transformer_kernel(x_ref, wq_ref, wk_ref, wv_ref, wo_ref,
                                bias_add_ref, w1_ref, b_hid_ref, w2_ref, b2_ref,
                                g1_ref, be1_ref, g2_ref, be2_ref, out_ref,
                                *, n_heads, key_dim, ln_eps):
    x = x_ref[...]                                                    # (N, F)

    # Fused per-head projections: one MXU call each, (N, F) x (F, H*K).
    q = jnp.dot(x, wq_ref[...], preferred_element_type=jnp.float32)  # (N, H*K)
    k = jnp.dot(x, wk_ref[...], preferred_element_type=jnp.float32)  # (N, H*K)
    v = jnp.dot(x, wv_ref[...], preferred_element_type=jnp.float32)  # (N, H*K)
    q = q * (1.0 / key_dim ** 0.5)                                   # score scaling (once, all heads)

    bias_add = bias_add_ref[...]   # identity_bias*I - 1e16*(1 - adj_with_self_loops), head-invariant

    # Per-head attention: short static (unrolled) loop over heads.
    ctx_parts = []
    for h in range(n_heads):
        lo = h * key_dim
        q_h = q[:, lo:lo + key_dim]                                   # (N, K)
        k_h = k[:, lo:lo + key_dim]                                   # (N, K)
        v_h = v[:, lo:lo + key_dim]                                   # (N, K)

        scores = jax.lax.dot_general(q_h, k_h, (((1,), (1,)), ((), ())),
                                     preferred_element_type=jnp.float32)  # (N, N) = q_h @ k_h^T
        scores = scores + bias_add

        m = jnp.max(scores, axis=-1, keepdims=True)
        p = jnp.exp(scores - m)
        denom = jnp.sum(p, axis=-1, keepdims=True)
        attn = p * pl.reciprocal(denom, approx=False)

        # TODO(synk): attention dropout (drop_att) omitted — eval-mode semantics.
        ctx_parts.append(jnp.dot(attn, v_h, preferred_element_type=jnp.float32))  # (N, K)

    ctx = jnp.concatenate(ctx_parts, axis=-1)                         # (N, H*K), lane-dense

    # Head-summed output projection:  sum_h ctx_h @ Wo[h]  ==  ctx @ Wo_flat.
    mha = jnp.dot(ctx, wo_ref[...], preferred_element_type=jnp.float32)   # (N, out_dim)

    def layer_norm(val, gamma, beta):
        mu = jnp.mean(val, axis=-1, keepdims=True)
        var = jnp.mean((val - mu) ** 2, axis=-1, keepdims=True)
        return (val - mu) * jax.lax.rsqrt(var + ln_eps) * gamma + beta

    h1 = layer_norm(mha, g1_ref[...], be1_ref[...])                   # ln1

    hid = jnp.dot(h1, w1_ref[...], preferred_element_type=jnp.float32)
    hid = jnp.maximum(hid + b_hid_ref[...], 0.0)                      # relu(linear1(x) + bias)
    # TODO(synk): hidden dropout (drop_hidden) omitted — eval-mode semantics.

    out = jnp.dot(hid, w2_ref[...], preferred_element_type=jnp.float32) + b2_ref[...]
    out_ref[...] = layer_norm(out, g2_ref[...], be2_ref[...])         # ln2


def vanilla_transformer_forward(node_matrix, adjacency_matrix, Wq, Wk, Wv, Wo,
                                W1, hidden_bias, W2, b2,
                                ln1_g, ln1_b, ln2_g, ln2_b,
                                *, identity_bias=0.0, ln_eps=1e-5):
    """Pallas-backed forward matching Layer_VanillaTransformer (eval mode)."""
    N, F = node_matrix.shape
    H, _, K = Wq.shape
    out_dim = Wo.shape[-1]

    # Head-major flattening so the per-head projections fuse into single matmuls.
    wq_flat = jnp.transpose(Wq, (1, 0, 2)).reshape(F, H * K)
    wk_flat = jnp.transpose(Wk, (1, 0, 2)).reshape(F, H * K)
    wv_flat = jnp.transpose(Wv, (1, 0, 2)).reshape(F, H * K)
    wo_flat = Wo.reshape(H * K, out_dim)

    # Head-invariant additive attention term, computed once (not per head in-kernel).
    eye = jnp.eye(N, dtype=jnp.float32)
    adj = jnp.maximum(adjacency_matrix.astype(jnp.float32), eye)      # force self-loops
    bias_add = identity_bias * eye - 1e16 * (1.0 - adj)

    row = lambda a: a.reshape(1, -1).astype(jnp.float32)

    vmem = pl.BlockSpec(memory_space=pltpu.MemorySpace.VMEM)
    kernel = functools.partial(_vanilla_transformer_kernel,
                               n_heads=H, key_dim=K, ln_eps=ln_eps)
    return pl.pallas_call(
        kernel,
        out_shape=jax.ShapeDtypeStruct((N, out_dim), jnp.float32),
        in_specs=[vmem] * 14,
        out_specs=vmem,
    )(node_matrix.astype(jnp.float32), wq_flat, wk_flat, wv_flat, wo_flat,
      bias_add, W1.astype(jnp.float32), row(hidden_bias),
      W2.astype(jnp.float32), row(b2),
      row(ln1_g), row(ln1_b), row(ln2_g), row(ln2_b))


def _reference_forward(node_matrix, adjacency_matrix, Wq, Wk, Wv, Wo,
                       W1, hidden_bias, W2, b2, ln1_g, ln1_b, ln2_g, ln2_b,
                       *, identity_bias, ln_eps=1e-5):
    """Pure-JAX mirror of the PyTorch forward (eval-mode dropout)."""
    N = node_matrix.shape[0]
    K = Wq.shape[-1]
    eye = jnp.eye(N, dtype=jnp.float32)
    adj = jnp.maximum(adjacency_matrix, eye)
    queries = jnp.einsum('ij,mjn->min', node_matrix, Wq)
    keys = jnp.einsum('ij,mjn->min', node_matrix, Wk)
    values = jnp.einsum('ij,mjn->min', node_matrix, Wv)
    atts = jnp.einsum('ikn,imn->ikm', queries, keys) / K ** 0.5
    atts = atts + (identity_bias * eye)[None]
    atts = atts - 1e16 * (1.0 - adj)[None]
    atts = jax.nn.softmax(atts, axis=-1)
    mha = jnp.einsum('ikl,ilm,imn->kn', atts, values, Wo)

    def ln(v, g, b):
        mu = v.mean(-1, keepdims=True)
        var = ((v - mu) ** 2).mean(-1, keepdims=True)
        return (v - mu) / jnp.sqrt(var + ln_eps) * g + b

    h = ln(mha, ln1_g, ln1_b)
    h = jnp.maximum(h @ W1 + hidden_bias, 0.0)
    h = h @ W2 + b2
    return ln(h, ln2_g, ln2_b)


def _xavier_normal(key, shape, gain):
    receptive = 1
    for s in shape[2:]:
        receptive *= s
    if len(shape) == 2:
        fan_in, fan_out = shape[1], shape[0]
    else:
        fan_in, fan_out = shape[1] * receptive, shape[0] * receptive
    std = gain * (2.0 / (fan_in + fan_out)) ** 0.5
    return std * jax.random.normal(key, shape, jnp.float32)


if __name__ == "__main__":
    # Small transductive problem consistent with the module.
    N, input_dim, key_dim, out_dim, n_heads, hidden_dim = 16, 32, 8, 32, 4, 64
    identity_bias = 0.01

    key = jax.random.PRNGKey(0)
    ks = jax.random.split(key, 9)

    node_matrix = jax.random.normal(ks[0], (N, input_dim), jnp.float32)
    adj = (jax.random.uniform(ks[1], (N, N)) < 0.35).astype(jnp.float32)
    adj = jnp.maximum(adj, adj.T)                 # symmetric; self-loops added in forward

    gain = 2.0 ** 0.5
    Wq = _xavier_normal(ks[2], (n_heads, input_dim, key_dim), gain)
    Wk = _xavier_normal(ks[3], (n_heads, input_dim, key_dim), gain)
    Wv = _xavier_normal(ks[4], (n_heads, input_dim, key_dim), gain)
    Wo = _xavier_normal(ks[5], (n_heads, key_dim, out_dim), gain)

    W1 = _xavier_normal(ks[6], (out_dim, hidden_dim), 1.0)          # linear1 (no bias)
    hidden_bias = jnp.full((hidden_dim,), 0.1, jnp.float32)         # nn.init.constant_(self.bias, 0.1)
    W2 = _xavier_normal(ks[7], (hidden_dim, out_dim), 1.0)          # linear2 weight
    b2 = 0.05 * jax.random.normal(ks[8], (out_dim,), jnp.float32)   # linear2 bias
    ln1_g = jnp.ones((out_dim,), jnp.float32)
    ln1_b = jnp.zeros((out_dim,), jnp.float32)
    ln2_g = jnp.ones((out_dim,), jnp.float32)
    ln2_b = jnp.zeros((out_dim,), jnp.float32)

    out = vanilla_transformer_forward(
        node_matrix, adj, Wq, Wk, Wv, Wo, W1, hidden_bias, W2, b2,
        ln1_g, ln1_b, ln2_g, ln2_b, identity_bias=identity_bias)
    out = jax.block_until_ready(out)

    ref = _reference_forward(
        node_matrix, adj, Wq, Wk, Wv, Wo, W1, hidden_bias, W2, b2,
        ln1_g, ln1_b, ln2_g, ln2_b, identity_bias=identity_bias)

    assert out.shape == (N, out_dim), out.shape
    assert jnp.allclose(out, ref, rtol=1e-4, atol=1e-4), "mismatch vs reference"
    print("KERNEL_OK")
</pallas_src>

<mosaic_0001>
module attributes {stable_mosaic.version = 11 : i64} {
  func.func @_vanilla_transformer_kernel(%arg0: memref<16x32xf32, #tpu.memory_space<vmem>>, %arg1: memref<32x32xf32, #tpu.memory_space<vmem>>, %arg2: memref<32x32xf32, #tpu.memory_space<vmem>>, %arg3: memref<32x32xf32, #tpu.memory_space<vmem>>, %arg4: memref<32x32xf32, #tpu.memory_space<vmem>>, %arg5: memref<16x16xf32, #tpu.memory_space<vmem>>, %arg6: memref<32x64xf32, #tpu.memory_space<vmem>>, %arg7: memref<1x64xf32, #tpu.memory_space<vmem>>, %arg8: memref<64x32xf32, #tpu.memory_space<vmem>>, %arg9: memref<1x32xf32, #tpu.memory_space<vmem>>, %arg10: memref<1x32xf32, #tpu.memory_space<vmem>>, %arg11: memref<1x32xf32, #tpu.memory_space<vmem>>, %arg12: memref<1x32xf32, #tpu.memory_space<vmem>>, %arg13: memref<1x32xf32, #tpu.memory_space<vmem>>, %arg14: memref<16x32xf32, #tpu.memory_space<vmem>>) attributes {dimension_semantics = [], scalar_prefetch = 0 : i64, scratch_operands = 0 : i64, tpu.core_type = #tpu.core_type<tc>} {
    %c0 = arith.constant 0 : index
    %c0_0 = arith.constant 0 : index
    %0 = vector.load %arg0[%c0, %c0_0] : memref<16x32xf32, #tpu.memory_space<vmem>>, vector<16x32xf32>
    %c0_1 = arith.constant 0 : index
    %c0_2 = arith.constant 0 : index
    %1 = vector.load %arg1[%c0_1, %c0_2] : memref<32x32xf32, #tpu.memory_space<vmem>>, vector<32x32xf32>
    %cst = arith.constant dense<0.000000e+00> : vector<16x32xf32>
    %2 = tpu.matmul %0, %1, %cst {dimension_numbers = #tpu.dot_dimension_numbers<[1], [0], [0], [1], [0, 0, 1, 1], [], []>} : vector<16x32xf32>, vector<32x32xf32>, vector<16x32xf32> -> vector<16x32xf32>
    %c0_3 = arith.constant 0 : index
    %c0_4 = arith.constant 0 : index
    %3 = vector.load %arg2[%c0_3, %c0_4] : memref<32x32xf32, #tpu.memory_space<vmem>>, vector<32x32xf32>
    %cst_5 = arith.constant dense<0.000000e+00> : vector<16x32xf32>
    %4 = tpu.matmul %0, %3, %cst_5 {dimension_numbers = #tpu.dot_dimension_numbers<[1], [0], [0], [1], [0, 0, 1, 1], [], []>} : vector<16x32xf32>, vector<32x32xf32>, vector<16x32xf32> -> vector<16x32xf32>
    %c0_6 = arith.constant 0 : index
    %c0_7 = arith.constant 0 : index
    %5 = vector.load %arg3[%c0_6, %c0_7] : memref<32x32xf32, #tpu.memory_space<vmem>>, vector<32x32xf32>
    %cst_8 = arith.constant dense<0.000000e+00> : vector<16x32xf32>
    %6 = tpu.matmul %0, %5, %cst_8 {dimension_numbers = #tpu.dot_dimension_numbers<[1], [0], [0], [1], [0, 0, 1, 1], [], []>} : vector<16x32xf32>, vector<32x32xf32>, vector<16x32xf32> -> vector<16x32xf32>
    %cst_9 = arith.constant 0.353553385 : f32
    %7 = vector.broadcast %cst_9 : f32 to vector<16x32xf32>
    %8 = arith.mulf %2, %7 : vector<16x32xf32>
    %c0_10 = arith.constant 0 : index
    %c0_11 = arith.constant 0 : index
    %9 = vector.load %arg5[%c0_10, %c0_11] : memref<16x16xf32, #tpu.memory_space<vmem>>, vector<16x16xf32>
    %10 = vector.extract_strided_slice %8 {offsets = [0, 0], sizes = [16, 8], strides = [1, 1]} : vector<16x32xf32> to vector<16x8xf32>
    %11 = vector.extract_strided_slice %4 {offsets = [0, 0], sizes = [16, 8], strides = [1, 1]} : vector<16x32xf32> to vector<16x8xf32>
    %12 = vector.extract_strided_slice %6 {offsets = [0, 0], sizes = [16, 8], strides = [1, 1]} : vector<16x32xf32> to vector<16x8xf32>
    %cst_12 = arith.constant dense<0.000000e+00> : vector<16x16xf32>
    %13 = tpu.matmul %10, %11, %cst_12 {dimension_numbers = #tpu.dot_dimension_numbers<[1], [1], [0], [0], [0, 0, 1, 0], [], []>} : vector<16x8xf32>, vector<16x8xf32>, vector<16x16xf32> -> vector<16x16xf32>
    %14 = arith.addf %13, %9 : vector<16x16xf32>
    %cst_13 = arith.constant dense<0xFF800000> : vector<16xf32>
    %15 = vector.multi_reduction <maximumf>, %14, %cst_13 [1] : vector<16x16xf32> to vector<16xf32>
    %16 = vector.shape_cast %15 : vector<16xf32> to vector<16x1xf32>
    %17 = vector.broadcast %16 : vector<16x1xf32> to vector<16x16xf32>
    %18 = arith.subf %14, %17 : vector<16x16xf32>
    %19 = math.exp %18 : vector<16x16xf32>
    %cst_14 = arith.constant dense<0.000000e+00> : vector<16xf32>
    %20 = vector.multi_reduction <add>, %19, %cst_14 [1] : vector<16x16xf32> to vector<16xf32>
    %21 = vector.shape_cast %20 : vector<16xf32> to vector<16x1xf32>
    %22 = tpu.reciprocal %21 : vector<16x1xf32> -> vector<16x1xf32>
    %23 = vector.broadcast %22 : vector<16x1xf32> to vector<16x16xf32>
    %24 = arith.mulf %19, %23 : vector<16x16xf32>
    %cst_15 = arith.constant dense<0.000000e+00> : vector<16x8xf32>
    %25 = tpu.matmul %24, %12, %cst_15 {dimension_numbers = #tpu.dot_dimension_numbers<[1], [0], [0], [1], [0, 0, 1, 1], [], []>} : vector<16x16xf32>, vector<16x8xf32>, vector<16x8xf32> -> vector<16x8xf32>
    %26 = vector.extract_strided_slice %8 {offsets = [0, 8], sizes = [16, 8], strides = [1, 1]} : vector<16x32xf32> to vector<16x8xf32>
    %27 = vector.extract_strided_slice %4 {offsets = [0, 8], sizes = [16, 8], strides = [1, 1]} : vector<16x32xf32> to vector<16x8xf32>
    %28 = vector.extract_strided_slice %6 {offsets = [0, 8], sizes = [16, 8], strides = [1, 1]} : vector<16x32xf32> to vector<16x8xf32>
    %cst_16 = arith.constant dense<0.000000e+00> : vector<16x16xf32>
    %29 = tpu.matmul %26, %27, %cst_16 {dimension_numbers = #tpu.dot_dimension_numbers<[1], [1], [0], [0], [0, 0, 1, 0], [], []>} : vector<16x8xf32>, vector<16x8xf32>, vector<16x16xf32> -> vector<16x16xf32>
    %30 = arith.addf %29, %9 : vector<16x16xf32>
    %cst_17 = arith.constant dense<0xFF800000> : vector<16xf32>
    %31 = vector.multi_reduction <maximumf>, %30, %cst_17 [1] : vector<16x16xf32> to vector<16xf32>
    %32 = vector.shape_cast %31 : vector<16xf32> to vector<16x1xf32>
    %33 = vector.broadcast %32 : vector<16x1xf32> to vector<16x16xf32>
    %34 = arith.subf %30, %33 : vector<16x16xf32>
    %35 = math.exp %34 : vector<16x16xf32>
    %cst_18 = arith.constant dense<0.000000e+00> : vector<16xf32>
    %36 = vector.multi_reduction <add>, %35, %cst_18 [1] : vector<16x16xf32> to vector<16xf32>
    %37 = vector.shape_cast %36 : vector<16xf32> to vector<16x1xf32>
    %38 = tpu.reciprocal %37 : vector<16x1xf32> -> vector<16x1xf32>
    %39 = vector.broadcast %38 : vector<16x1xf32> to vector<16x16xf32>
    %40 = arith.mulf %35, %39 : vector<16x16xf32>
    %cst_19 = arith.constant dense<0.000000e+00> : vector<16x8xf32>
    %41 = tpu.matmul %40, %28, %cst_19 {dimension_numbers = #tpu.dot_dimension_numbers<[1], [0], [0], [1], [0, 0, 1, 1], [], []>} : vector<16x16xf32>, vector<16x8xf32>, vector<16x8xf32> -> vector<16x8xf32>
    %42 = vector.extract_strided_slice %8 {offsets = [0, 16], sizes = [16, 8], strides = [1, 1]} : vector<16x32xf32> to vector<16x8xf32>
    %43 = vector.extract_strided_slice %4 {offsets = [0, 16], sizes = [16, 8], strides = [1, 1]} : vector<16x32xf32> to vector<16x8xf32>
    %44 = vector.extract_strided_slice %6 {offsets = [0, 16], sizes = [16, 8], strides = [1, 1]} : vector<16x32xf32> to vector<16x8xf32>
    %cst_20 = arith.constant dense<0.000000e+00> : vector<16x16xf32>
    %45 = tpu.matmul %42, %43, %cst_20 {dimension_numbers = #tpu.dot_dimension_numbers<[1], [1], [0], [0], [0, 0, 1, 0], [], []>} : vector<16x8xf32>, vector<16x8xf32>, vector<16x16xf32> -> vector<16x16xf32>
    %46 = arith.addf %45, %9 : vector<16x16xf32>
    %cst_21 = arith.constant dense<0xFF800000> : vector<16xf32>
    %47 = vector.multi_reduction <maximumf>, %46, %cst_21 [1] : vector<16x16xf32> to vector<16xf32>
    %48 = vector.shape_cast %47 : vector<16xf32> to vector<16x1xf32>
    %49 = vector.broadcast %48 : vector<16x1xf32> to vector<16x16xf32>
    %50 = arith.subf %46, %49 : vector<16x16xf32>
    %51 = math.exp %50 : vector<16x16xf32>
    %cst_22 = arith.constant dense<0.000000e+00> : vector<16xf32>
    %52 = vector.multi_reduction <add>, %51, %cst_22 [1] : vector<16x16xf32> to vector<16xf32>
    %53 = vector.shape_cast %52 : vector<16xf32> to vector<16x1xf32>
    %54 = tpu.reciprocal %53 : vector<16x1xf32> -> vector<16x1xf32>
    %55 = vector.broadcast %54 : vector<16x1xf32> to vector<16x16xf32>
    %56 = arith.mulf %51, %55 : vector<16x16xf32>
    %cst_23 = arith.constant dense<0.000000e+00> : vector<16x8xf32>
    %57 = tpu.matmul %56, %44, %cst_23 {dimension_numbers = #tpu.dot_dimension_numbers<[1], [0], [0], [1], [0, 0, 1, 1], [], []>} : vector<16x16xf32>, vector<16x8xf32>, vector<16x8xf32> -> vector<16x8xf32>
    %58 = vector.extract_strided_slice %8 {offsets = [0, 24], sizes = [16, 8], strides = [1, 1]} : vector<16x32xf32> to vector<16x8xf32>
    %59 = vector.extract_strided_slice %4 {offsets = [0, 24], sizes = [16, 8], strides = [1, 1]} : vector<16x32xf32> to vector<16x8xf32>
    %60 = vector.extract_strided_slice %6 {offsets = [0, 24], sizes = [16, 8], strides = [1, 1]} : vector<16x32xf32> to vector<16x8xf32>
    %cst_24 = arith.constant dense<0.000000e+00> : vector<16x16xf32>
    %61 = tpu.matmul %58, %59, %cst_24 {dimension_numbers = #tpu.dot_dimension_numbers<[1], [1], [0], [0], [0, 0, 1, 0], [], []>} : vector<16x8xf32>, vector<16x8xf32>, vector<16x16xf32> -> vector<16x16xf32>
    %62 = arith.addf %61, %9 : vector<16x16xf32>
    %cst_25 = arith.constant dense<0xFF800000> : vector<16xf32>
    %63 = vector.multi_reduction <maximumf>, %62, %cst_25 [1] : vector<16x16xf32> to vector<16xf32>
    %64 = vector.shape_cast %63 : vector<16xf32> to vector<16x1xf32>
    %65 = vector.broadcast %64 : vector<16x1xf32> to vector<16x16xf32>
    %66 = arith.subf %62, %65 : vector<16x16xf32>
    %67 = math.exp %66 : vector<16x16xf32>
    %cst_26 = arith.constant dense<0.000000e+00> : vector<16xf32>
    %68 = vector.multi_reduction <add>, %67, %cst_26 [1] : vector<16x16xf32> to vector<16xf32>
    %69 = vector.shape_cast %68 : vector<16xf32> to vector<16x1xf32>
    %70 = tpu.reciprocal %69 : vector<16x1xf32> -> vector<16x1xf32>
    %71 = vector.broadcast %70 : vector<16x1xf32> to vector<16x16xf32>
    %72 = arith.mulf %67, %71 : vector<16x16xf32>
    %cst_27 = arith.constant dense<0.000000e+00> : vector<16x8xf32>
    %73 = tpu.matmul %72, %60, %cst_27 {dimension_numbers = #tpu.dot_dimension_numbers<[1], [0], [0], [1], [0, 0, 1, 1], [], []>} : vector<16x16xf32>, vector<16x8xf32>, vector<16x8xf32> -> vector<16x8xf32>
    %74 = tpu.concatenate %25, %41, %57, %73 in 1 : vector<16x8xf32>, vector<16x8xf32>, vector<16x8xf32>, vector<16x8xf32> -> vector<16x32xf32>
    %c0_28 = arith.constant 0 : index
    %c0_29 = arith.constant 0 : index
    %75 = vector.load %arg4[%c0_28, %c0_29] : memref<32x32xf32, #tpu.memory_space<vmem>>, vector<32x32xf32>
    %cst_30 = arith.constant dense<0.000000e+00> : vector<16x32xf32>
    %76 = tpu.matmul %74, %75, %cst_30 {dimension_numbers = #tpu.dot_dimension_numbers<[1], [0], [0], [1], [0, 0, 1, 1], [], []>} : vector<16x32xf32>, vector<32x32xf32>, vector<16x32xf32> -> vector<16x32xf32>
    %c0_31 = arith.constant 0 : index
    %c0_32 = arith.constant 0 : index
    %77 = vector.load %arg10[%c0_31, %c0_32] : memref<1x32xf32, #tpu.memory_space<vmem>>, vector<1x32xf32>
    %c0_33 = arith.constant 0 : index
    %c0_34 = arith.constant 0 : index
    %78 = vector.load %arg11[%c0_33, %c0_34] : memref<1x32xf32, #tpu.memory_space<vmem>>, vector<1x32xf32>
    %cst_35 = arith.constant dense<0.000000e+00> : vector<16xf32>
    %79 = vector.multi_reduction <add>, %76, %cst_35 [1] : vector<16x32xf32> to vector<16xf32>
    %80 = vector.shape_cast %79 : vector<16xf32> to vector<16x1xf32>
    %cst_36 = arith.constant 3.200000e+01 : f32
    %81 = vector.broadcast %cst_36 : f32 to vector<16x1xf32>
    %82 = arith.divf %80, %81 : vector<16x1xf32>
    %83 = vector.broadcast %82 : vector<16x1xf32> to vector<16x32xf32>
    %84 = arith.subf %76, %83 : vector<16x32xf32>
    %85 = arith.mulf %84, %84 : vector<16x32xf32>
    %cst_37 = arith.constant dense<0.000000e+00> : vector<16xf32>
    %86 = vector.multi_reduction <add>, %85, %cst_37 [1] : vector<16x32xf32> to vector<16xf32>
    %87 = vector.shape_cast %86 : vector<16xf32> to vector<16x1xf32>
    %cst_38 = arith.constant 3.200000e+01 : f32
    %88 = vector.broadcast %cst_38 : f32 to vector<16x1xf32>
    %89 = arith.divf %87, %88 : vector<16x1xf32>
    %90 = vector.broadcast %82 : vector<16x1xf32> to vector<16x32xf32>
    %91 = arith.subf %76, %90 : vector<16x32xf32>
    %cst_39 = arith.constant 9.99999974E-6 : f32
    %92 = vector.broadcast %cst_39 : f32 to vector<16x1xf32>
    %93 = arith.addf %89, %92 : vector<16x1xf32>
    %94 = math.rsqrt %93 : vector<16x1xf32>
    %95 = vector.broadcast %94 : vector<16x1xf32> to vector<16x32xf32>
    %96 = arith.mulf %91, %95 : vector<16x32xf32>
    %97 = vector.broadcast %77 : vector<1x32xf32> to vector<16x32xf32>
    %98 = arith.mulf %96, %97 : vector<16x32xf32>
    %99 = vector.broadcast %78 : vector<1x32xf32> to vector<16x32xf32>
    %100 = arith.addf %98, %99 : vector<16x32xf32>
    %c0_40 = arith.constant 0 : index
    %c0_41 = arith.constant 0 : index
    %101 = vector.load %arg6[%c0_40, %c0_41] : memref<32x64xf32, #tpu.memory_space<vmem>>, vector<32x64xf32>
    %cst_42 = arith.constant dense<0.000000e+00> : vector<16x64xf32>
    %102 = tpu.matmul %100, %101, %cst_42 {dimension_numbers = #tpu.dot_dimension_numbers<[1], [0], [0], [1], [0, 0, 1, 1], [], []>} : vector<16x32xf32>, vector<32x64xf32>, vector<16x64xf32> -> vector<16x64xf32>
    %c0_43 = arith.constant 0 : index
    %c0_44 = arith.constant 0 : index
    %103 = vector.load %arg7[%c0_43, %c0_44] : memref<1x64xf32, #tpu.memory_space<vmem>>, vector<1x64xf32>
    %104 = vector.broadcast %103 : vector<1x64xf32> to vector<16x64xf32>
    %105 = arith.addf %102, %104 : vector<16x64xf32>
    %cst_45 = arith.constant 0.000000e+00 : f32
    %106 = vector.broadcast %cst_45 : f32 to vector<16x64xf32>
    %107 = arith.maximumf %105, %106 : vector<16x64xf32>
    %c0_46 = arith.constant 0 : index
    %c0_47 = arith.constant 0 : index
    %108 = vector.load %arg8[%c0_46, %c0_47] : memref<64x32xf32, #tpu.memory_space<vmem>>, vector<64x32xf32>
    %cst_48 = arith.constant dense<0.000000e+00> : vector<16x32xf32>
    %109 = tpu.matmul %107, %108, %cst_48 {dimension_numbers = #tpu.dot_dimension_numbers<[1], [0], [0], [1], [0, 0, 1, 1], [], []>} : vector<16x64xf32>, vector<64x32xf32>, vector<16x32xf32> -> vector<16x32xf32>
    %c0_49 = arith.constant 0 : index
    %c0_50 = arith.constant 0 : index
    %110 = vector.load %arg9[%c0_49, %c0_50] : memref<1x32xf32, #tpu.memory_space<vmem>>, vector<1x32xf32>
    %111 = vector.broadcast %110 : vector<1x32xf32> to vector<16x32xf32>
    %112 = arith.addf %109, %111 : vector<16x32xf32>
    %c0_51 = arith.constant 0 : index
    %c0_52 = arith.constant 0 : index
    %113 = vector.load %arg12[%c0_51, %c0_52] : memref<1x32xf32, #tpu.memory_space<vmem>>, vector<1x32xf32>
    %c0_53 = arith.constant 0 : index
    %c0_54 = arith.constant 0 : index
    %114 = vector.load %arg13[%c0_53, %c0_54] : memref<1x32xf32, #tpu.memory_space<vmem>>, vector<1x32xf32>
    %cst_55 = arith.constant dense<0.000000e+00> : vector<16xf32>
    %115 = vector.multi_reduction <add>, %112, %cst_55 [1] : vector<16x32xf32> to vector<16xf32>
    %116 = vector.shape_cast %115 : vector<16xf32> to vector<16x1xf32>
    %cst_56 = arith.constant 3.200000e+01 : f32
    %117 = vector.broadcast %cst_56 : f32 to vector<16x1xf32>
    %118 = arith.divf %116, %117 : vector<16x1xf32>
    %119 = vector.broadcast %118 : vector<16x1xf32> to vector<16x32xf32>
    %120 = arith.subf %112, %119 : vector<16x32xf32>
    %121 = arith.mulf %120, %120 : vector<16x32xf32>
    %cst_57 = arith.constant dense<0.000000e+00> : vector<16xf32>
    %122 = vector.multi_reduction <add>, %121, %cst_57 [1] : vector<16x32xf32> to vector<16xf32>
    %123 = vector.shape_cast %122 : vector<16xf32> to vector<16x1xf32>
    %cst_58 = arith.constant 3.200000e+01 : f32
    %124 = vector.broadcast %cst_58 : f32 to vector<16x1xf32>
    %125 = arith.divf %123, %124 : vector<16x1xf32>
    %126 = vector.broadcast %118 : vector<16x1xf32> to vector<16x32xf32>
    %127 = arith.subf %112, %126 : vector<16x32xf32>
    %cst_59 = arith.constant 9.99999974E-6 : f32
    %128 = vector.broadcast %cst_59 : f32 to vector<16x1xf32>
    %129 = arith.addf %125, %128 : vector<16x1xf32>
    %130 = math.rsqrt %129 : vector<16x1xf32>
    %131 = vector.broadcast %130 : vector<16x1xf32> to vector<16x32xf32>
    %132 = arith.mulf %127, %131 : vector<16x32xf32>
    %133 = vector.broadcast %113 : vector<1x32xf32> to vector<16x32xf32>
    %134 = arith.mulf %132, %133 : vector<16x32xf32>
    %135 = vector.broadcast %114 : vector<1x32xf32> to vector<16x32xf32>
    %136 = arith.addf %134, %135 : vector<16x32xf32>
    %c0_60 = arith.constant 0 : index
    %c0_61 = arith.constant 0 : index
    %137 = vector.load %arg14[%c0_60, %c0_61] : memref<16x32xf32, #tpu.memory_space<vmem>>, vector<16x32xf32>
    tpu.vector_store %arg14[%c0_60, %c0_61], %136 {strides = array<i32>} : memref<16x32xf32, #tpu.memory_space<vmem>>, vector<16x32xf32>,
    return
  }
}

</mosaic_0001>

<llo_original>
// kernel: tpu_custom_call.1
$region0: #{tpu_custom_call.1}
  #allocation0 [shape = 'u32[]', space=smem, size = 0x4, offset = 0x4, fixed_abs, tag = 'smem constant byte address 0x4 - core index']
  #allocation1 [shape = 'u32[144,128]{1,0:T(1,128)}', space=vmem, size = 0x12000, scoped, tag = 'internal scratch']
  %s0 = inlined_call_operand.hbm [shape: f32[16,32], index: 0, kind: input, shape index: {}]
  %s1 = inlined_call_operand.vmem [shape: f32[32,32], index: 1, kind: input, shape index: {}]
  %s2 = inlined_call_operand.vmem [shape: f32[32,32], index: 2, kind: input, shape index: {}]
  %s3 = inlined_call_operand.vmem [shape: f32[32,32], index: 3, kind: input, shape index: {}]
  %s4 = inlined_call_operand.hbm [shape: f32[32,32], index: 4, kind: input, shape index: {}]
  %s5 = inlined_call_operand.vmem [shape: f32[16,16], index: 5, kind: input, shape index: {}]
  %s6 = inlined_call_operand.hbm [shape: f32[32,64], index: 6, kind: input, shape index: {}]
  %s7 = inlined_call_operand.vmem [shape: f32[1,64], index: 7, kind: input, shape index: {}]
  %s8 = inlined_call_operand.vmem [shape: f32[64,32], index: 8, kind: input, shape index: {}]
  %s9 = inlined_call_operand.vmem [shape: f32[1,32], index: 9, kind: input, shape index: {}]
  %s10 = inlined_call_operand.vmem [shape: f32[1,32], index: 10, kind: input, shape index: {}]
  %s11 = inlined_call_operand.vmem [shape: f32[1,32], index: 11, kind: input, shape index: {}]
  %s12 = inlined_call_operand.vmem [shape: f32[1,32], index: 12, kind: input, shape index: {}]
  %s13 = inlined_call_operand.vmem [shape: f32[1,32], index: 13, kind: input, shape index: {}]
  %s14 = inlined_call_operand.hbm [shape: f32[16,32], index: 14, kind: output, shape index: {}]
  %s15 = sld [smem:[#allocation0]]
  $region78: #{tpu_custom_call.1} parent=0
    _
  %s17 = ssub.s32 1, %s15
  %s18 = scalar_select 0, %s17, %s15
  $region1: #{tpu_custom_call.1} parent=0
    #allocation2 [shape = 'u8[8192]{0}', space=vmem, size = 0x2000, scoped, tag = 'input window, operand 0, single buffered']
    #allocation3 [shape = 's32[1]{0}', space=sflag, size = 0x4, scoped, tag = 'scoped memory for tpu_custom_call.1']
    #allocation4 [shape = 's32[1]{0}', space=sflag, size = 0x4, scoped, tag = 'scoped memory for tpu_custom_call.1']
    #allocation5 [shape = 'u8[16384]{0}', space=vmem, size = 0x4000, scoped, tag = 'input window, operand 4, single buffered']
    #allocation6 [shape = 's32[1]{0}', space=sflag, size = 0x4, scoped, tag = 'scoped memory for tpu_custom_call.1']
    #allocation7 [shape = 'u8[16384]{0}', space=vmem, size = 0x4000, scoped, tag = 'input window, operand 6, single buffered']
    #allocation8 [shape = 'u8[8192]{0}', space=vmem, size = 0x2000, scoped, tag = 'output window, operand 0, single buffered']
    %19 = vsyncpa [#allocation3], 0
    %20 = vsyncpa [#allocation6], 0
    %21 = vsyncpa [#allocation4], 0
    // Predicated region
    $region2: #{tpu_custom_call.1} parent=1 // pred_check
      _
    $region3: #{tpu_custom_call.1} parent=1 // pred_check_branch
      %23 = sbr.rel (0) target = $region5
    $region4: #{tpu_custom_call.1} parent=1 // pred_region
      %s25 = ssub.s32 256, 256
      %26 = vsyncadd [#allocation3], %s25
      %s27 = sshll.u32 [#allocation2], 4
      %s28 = int_to_ptr.vmem [resolvable:$true] %s27
      %33 = dma.hbm_to_vmem [thread:$0]  %s0, 256, %s28, [#allocation3], 128, 128, 8
    $region5: #{tpu_custom_call.1} parent=1 // pred_fallthru
      _
    // Predicated region
    $region6: #{tpu_custom_call.1} parent=1 // pred_check
      _
    $region7: #{tpu_custom_call.1} parent=1 // pred_check_branch
      %35 = sbr.rel (0) target = $region9
    $region8: #{tpu_custom_call.1} parent=1 // pred_region
      _
    $region9: #{tpu_custom_call.1} parent=1 // pred_fallthru
      _
    // Predicated region
    $region10: #{tpu_custom_call.1} parent=1 // pred_check
      _
    $region11: #{tpu_custom_call.1} parent=1 // pred_check_branch
      %37 = sbr.rel (0) target = $region13
    $region12: #{tpu_custom_call.1} parent=1 // pred_region
      _
    $region13: #{tpu_custom_call.1} parent=1 // pred_fallthru
      _
    // Predicated region
    $region14: #{tpu_custom_call.1} parent=1 // pred_check
      _
    $region15: #{tpu_custom_call.1} parent=1 // pred_check_branch
      %39 = sbr.rel (0) target = $region17
    $region16: #{tpu_custom_call.1} parent=1 // pred_region
      _
    $region17: #{tpu_custom_call.1} parent=1 // pred_fallthru
      _
    // Predicated region
    $region18: #{tpu_custom_call.1} parent=1 // pred_check
      _
    $region19: #{tpu_custom_call.1} parent=1 // pred_check_branch
      %41 = sbr.rel (0) target = $region21
    $region20: #{tpu_custom_call.1} parent=1 // pred_region
      %s43 = ssub.s32 512, 512
      %44 = vsyncadd [#allocation6], %s43
      %s45 = sshll.u32 [#allocation5], 4
      %s46 = int_to_ptr.vmem [resolvable:$true] %s45
      %51 = dma.hbm_to_vmem [thread:$0]  %s4, 512, %s46, [#allocation6], 128, 128, 8
    $region21: #{tpu_custom_call.1} parent=1 // pred_fallthru
      _
    // Predicated region
    $region22: #{tpu_custom_call.1} parent=1 // pred_check
      _
    $region23: #{tpu_custom_call.1} parent=1 // pred_check_branch
      %53 = sbr.rel (0) target = $region25
    $region24: #{tpu_custom_call.1} parent=1 // pred_region
      _
    $region25: #{tpu_custom_call.1} parent=1 // pred_fallthru
      _
    // Predicated region
    $region26: #{tpu_custom_call.1} parent=1 // pred_check
      _
    $region27: #{tpu_custom_call.1} parent=1 // pred_check_branch
      %55 = sbr.rel (0) target = $region29
    $region28: #{tpu_custom_call.1} parent=1 // pred_region
      %s57 = ssub.s32 512, 512
      %58 = vsyncadd [#allocation6], %s57
      %s59 = sshll.u32 [#allocation7], 4
      %s60 = int_to_ptr.vmem [resolvable:$true] %s59
      %65 = dma.hbm_to_vmem [thread:$0]  %s6, 512, %s60, [#allocation6], 128, 128, 8
    $region29: #{tpu_custom_call.1} parent=1 // pred_fallthru
      _
    // Predicated region
    $region30: #{tpu_custom_call.1} parent=1 // pred_check
      _
    $region31: #{tpu_custom_call.1} parent=1 // pred_check_branch
      %67 = sbr.rel (0) target = $region33
    $region32: #{tpu_custom_call.1} parent=1 // pred_region
      _
    $region33: #{tpu_custom_call.1} parent=1 // pred_fallthru
      _
    // Predicated region
    $region34: #{tpu_custom_call.1} parent=1 // pred_check
      _
    $region35: #{tpu_custom_call.1} parent=1 // pred_check_branch
      %69 = sbr.rel (0) target = $region37
    $region36: #{tpu_custom_call.1} parent=1 // pred_region
      _
    $region37: #{tpu_custom_call.1} parent=1 // pred_fallthru
      _
    // Predicated region
    $region38: #{tpu_custom_call.1} parent=1 // pred_check
      _
    $region39: #{tpu_custom_call.1} parent=1 // pred_check_branch
      %71 = sbr.rel (0) target = $region41
    $region40: #{tpu_custom_call.1} parent=1 // pred_region
      _
    $region41: #{tpu_custom_call.1} parent=1 // pred_fallthru
      _
    // Predicated region
    $region42: #{tpu_custom_call.1} parent=1 // pred_check
      _
    $region43: #{tpu_custom_call.1} parent=1 // pred_check_branch
      %73 = sbr.rel (0) target = $region45
    $region44: #{tpu_custom_call.1} parent=1 // pred_region
      _
    $region45: #{tpu_custom_call.1} parent=1 // pred_fallthru
      _
    // Predicated region
    $region46: #{tpu_custom_call.1} parent=1 // pred_check
      _
    $region47: #{tpu_custom_call.1} parent=1 // pred_check_branch
      %75 = sbr.rel (0) target = $region49
    $region48: #{tpu_custom_call.1} parent=1 // pred_region
      _
    $region49: #{tpu_custom_call.1} parent=1 // pred_fallthru
      _
    // Predicated region
    $region50: #{tpu_custom_call.1} parent=1 // pred_check
      _
    $region51: #{tpu_custom_call.1} parent=1 // pred_check_branch
      %77 = sbr.rel (0) target = $region53
    $region52: #{tpu_custom_call.1} parent=1 // pred_region
      _
    $region53: #{tpu_custom_call.1} parent=1 // pred_fallthru
      _
    // Predicated region
    $region54: #{tpu_custom_call.1} parent=1 // pred_check
      _
    $region55: #{tpu_custom_call.1} parent=1 // pred_check_branch
      %79 = sbr.rel (0) target = $region57
    $region56: #{tpu_custom_call.1} parent=1 // pred_region
      _
    $region57: #{tpu_custom_call.1} parent=1 // pred_fallthru
      _
    // Predicated region
    $region58: #{tpu_custom_call.1} parent=1 // pred_check
      _
    $region59: #{tpu_custom_call.1} parent=1 // pred_check_branch
      %81 = sbr.rel (0) target = $region61
    $region60: #{tpu_custom_call.1} parent=1 // pred_region
      %82 = dma.done [#allocation3], 256
    $region61: #{tpu_custom_call.1} parent=1 // pred_fallthru
      _
    // Predicated region
    $region62: #{tpu_custom_call.1} parent=1 // pred_check
      _
    $region63: #{tpu_custom_call.1} parent=1 // pred_check_branch
      %84 = sbr.rel (0) target = $region65
    $region64: #{tpu_custom_call.1} parent=1 // pred_region
      %85 = dma.done [#allocation6], 512
    $region65: #{tpu_custom_call.1} parent=1 // pred_fallthru
      _
    // Predicated region
    $region66: #{tpu_custom_call.1} parent=1 // pred_check
      _
    $region67: #{tpu_custom_call.1} parent=1 // pred_check_branch
      %87 = sbr.rel (0) target = $region69
    $region68: #{tpu_custom_call.1} parent=1 // pred_region
      %88 = dma.done [#allocation6], 512
    $region69: #{tpu_custom_call.1} parent=1 // pred_fallthru
      _
    %v89 = vld [vmem:[#allocation2] sm:$0xff]
    %v90 = vld [vmem:[#allocation2 + $0x8] sm:$0xff]
    %v91 = vld [vmem:[%s1] sm:$0xff]
    %v92 = vld [vmem:[%s1 + $0x8] sm:$0xff]
    %v93 = vld [vmem:[%s1 + $0x10] sm:$0xff]
    %v94 = vld [vmem:[%s1 + $0x18] sm:$0xff]
    %vm95 = vcmask 261120
    %v97 = vsel %vm95, %v89, 0
    %v100 = vsel %vm95, %v90, 0
    %102 = vmatprep.subr.mxu0 0.0
    %103 = vmatpush1.msra.mxu0 %v91
    %104 = vmatprep.subr.mxu0 0.0
    %105 = vmatpush1.msra.mxu0 %v92
    %106 = vmatprep.subr.mxu0 0.0
    %107 = vmatpush1.msra.mxu0 %v93
    %108 = vmatprep.subr.mxu0 0.0
    %109 = vmatpush1.msra.mxu0 %v94
    %110 = vmatprep.subr.mxu0 0.0
    %111 = vmatpush1.msra.mxu0 0.0
    %112 = vmatprep.subr.mxu0 0.0
    %113 = vmatpush1.msra.mxu0 0.0
    %114 = vmatprep.subr.mxu0 0.0
    %115 = vmatpush1.msra.mxu0 0.0
    %116 = vmatprep.subr.mxu0 0.0
    %117 = vmatpush1.msra.mxu0 0.0
    %118 = vmatprep.subr.mxu0 0.0
    %119 = vmatpush1.msra.mxu0 0.0
    %120 = vmatprep.subr.mxu0 0.0
    %121 = vmatpush1.msra.mxu0 0.0
    %122 = vmatprep.subr.mxu0 0.0
    %123 = vmatpush1.msra.mxu0 0.0
    %124 = vmatprep.subr.mxu0 0.0
    %125 = vmatpush1.msra.mxu0 0.0
    %126 = vmatprep.subr.mxu0 0.0
    %127 = vmatpush1.msra.mxu0 0.0
    %128 = vmatprep.subr.mxu0 0.0
    %129 = vmatpush1.msra.mxu0 0.0
    %130 = vmatprep.subr.mxu0 0.0
    %131 = vmatpush1.msra.mxu0 0.0
    %132 = vmatprep.subr.mxu0 0.0
    %133 = vmatpush1.msra.mxu0 0.0
    %134 = vmatprep.subr.mxu0 0.0
    %135 = vmatpush1.msra.mxu0 0.0
    %136 = vmatprep.subr.mxu0 0.0
    %137 = vmatpush1.msra.mxu0 0.0
    %138 = vmatprep.subr.mxu0 0.0
    %139 = vmatpush1.msra.mxu0 0.0
    %140 = vmatprep.subr.mxu0 0.0
    %141 = vmatpush1.msra.mxu0 0.0
    %142 = vmatprep.subr.mxu0 0.0
    %143 = vmatpush1.msra.mxu0 0.0
    %144 = vmatprep.subr.mxu0 0.0
    %145 = vmatpush1.msra.mxu0 0.0
    %146 = vmatprep.subr.mxu0 0.0
    %147 = vmatpush1.msra.mxu0 0.0
    %148 = vmatprep.subr.mxu0 0.0
    %149 = vmatpush1.msra.mxu0 0.0
    %150 = vmatprep.subr.mxu0 0.0
    %151 = vmatpush1.msra.mxu0 0.0
    %152 = vmatprep.subr.mxu0 0.0
    %153 = vmatpush1.msra.mxu0 0.0
    %154 = vmatprep.subr.mxu0 0.0
    %155 = vmatpush1.msra.mxu0 0.0
    %156 = vmatprep.subr.mxu0 0.0
    %157 = vmatpush1.msra.mxu0 0.0
    %158 = vmatprep.subr.mxu0 0.0
    %159 = vmatpush1.msra.mxu0 0.0
    %160 = vmatprep.subr.mxu0 0.0
    %161 = vmatpush1.msra.mxu0 0.0
    %162 = vmatprep.subr.mxu0 0.0
    %163 = vmatpush1.msra.mxu0 0.0
    %164 = vmatprep.subr.mxu0 0.0
    %165 = vmatpush1.msra.mxu0 0.0
    %166 = vmatprep.mubr.f32.mxu0 0.0
    %167 = vmatmul.mubr.f32.gmra.mrb[0].mxu0 %v97
    %v168 = vpop.f32.mrb[0].mxu0
    %v169 = vadd.f32 0.0, %v168
    %v170 = vpop.f32.mrb[0].mxu0
    %171 = vmatprep.mubr.f32.mxu0 0.0
    %172 = vmatmul.mubr.f32.gmra.mrb[0].mxu0 %v100
    %v173 = vpop.f32.mrb[0].mxu0
    %v174 = vadd.f32 0.0, %v173
    %v175 = vpop.f32.mrb[0].mxu0
    %176 = vdwg.mxu0
    %v177 = vld [vmem:[%s2] sm:$0xff]
    %v178 = vld [vmem:[%s2 + $0x8] sm:$0xff]
    %v179 = vld [vmem:[%s2 + $0x10] sm:$0xff]
    %v180 = vld [vmem:[%s2 + $0x18] sm:$0xff]
    %181 = vmatprep.subr.mxu0 0.0
    %182 = vmatpush1.msra.mxu0 %v177
    %183 = vmatprep.subr.mxu0 0.0
    %184 = vmatpush1.msra.mxu0 %v178
    %185 = vmatprep.subr.mxu0 0.0
    %186 = vmatpush1.msra.mxu0 %v179
    %187 = vmatprep.subr.mxu0 0.0
    %188 = vmatpush1.msra.mxu0 %v180
    %189 = vmatprep.subr.mxu0 0.0
    %190 = vmatpush1.msra.mxu0 0.0
    %191 = vmatprep.subr.mxu0 0.0
    %192 = vmatpush1.msra.mxu0 0.0
    %193 = vmatprep.subr.mxu0 0.0
    %194 = vmatpush1.msra.mxu0 0.0
    %195 = vmatprep.subr.mxu0 0.0
    %196 = vmatpush1.msra.mxu0 0.0
    %197 = vmatprep.subr.mxu0 0.0
    %198 = vmatpush1.msra.mxu0 0.0
    %199 = vmatprep.subr.mxu0 0.0
    %200 = vmatpush1.msra.mxu0 0.0
    %201 = vmatprep.subr.mxu0 0.0
    %202 = vmatpush1.msra.mxu0 0.0
    %203 = vmatprep.subr.mxu0 0.0
    %204 = vmatpush1.msra.mxu0 0.0
    %205 = vmatprep.subr.mxu0 0.0
    %206 = vmatpush1.msra.mxu0 0.0
    %207 = vmatprep.subr.mxu0 0.0
    %208 = vmatpush1.msra.mxu0 0.0
    %209 = vmatprep.subr.mxu0 0.0
    %210 = vmatpush1.msra.mxu0 0.0
    %211 = vmatprep.subr.mxu0 0.0
    %212 = vmatpush1.msra.mxu0 0.0
    %213 = vmatprep.subr.mxu0 0.0
    %214 = vmatpush1.msra.mxu0 0.0
    %215 = vmatprep.subr.mxu0 0.0
    %216 = vmatpush1.msra.mxu0 0.0
    %217 = vmatprep.subr.mxu0 0.0
    %218 = vmatpush1.msra.mxu0 0.0
    %219 = vmatprep.subr.mxu0 0.0
    %220 = vmatpush1.msra.mxu0 0.0
    %221 = vmatprep.subr.mxu0 0.0
    %222 = vmatpush1.msra.mxu0 0.0
    %223 = vmatprep.subr.mxu0 0.0
    %224 = vmatpush1.msra.mxu0 0.0
    %225 = vmatprep.subr.mxu0 0.0
    %226 = vmatpush1.msra.mxu0 0.0
    %227 = vmatprep.subr.mxu0 0.0
    %228 = vmatpush1.msra.mxu0 0.0
    %229 = vmatprep.subr.mxu0 0.0
    %230 = vmatpush1.msra.mxu0 0.0
    %231 = vmatprep.subr.mxu0 0.0
    %232 = vmatpush1.msra.mxu0 0.0
    %233 = vmatprep.subr.mxu0 0.0
    %234 = vmatpush1.msra.mxu0 0.0
    %235 = vmatprep.subr.mxu0 0.0
    %236 = vmatpush1.msra.mxu0 0.0
    %237 = vmatprep.subr.mxu0 0.0
    %238 = vmatpush1.msra.mxu0 0.0
    %239 = vmatprep.subr.mxu0 0.0
    %240 = vmatpush1.msra.mxu0 0.0
    %241 = vmatprep.subr.mxu0 0.0
    %242 = vmatpush1.msra.mxu0 0.0
    %243 = vmatprep.subr.mxu0 0.0
    %244 = vmatpush1.msra.mxu0 0.0
    %245 = vmatprep.mubr.f32.mxu0 0.0
    %246 = vmatmul.mubr.f32.gmra.mrb[0].mxu0 %v97
    %v247 = vpop.f32.mrb[0].mxu0
    %v248 = vadd.f32 0.0, %v247
    %v249 = vpop.f32.mrb[0].mxu0
    %250 = vmatprep.mubr.f32.mxu0 0.0
    %251 = vmatmul.mubr.f32.gmra.mrb[0].mxu0 %v100
    %v252 = vpop.f32.mrb[0].mxu0
    %v253 = vadd.f32 0.0, %v252
    %v254 = vpop.f32.mrb[0].mxu0
    %255 = vdwg.mxu0
    %v256 = vld [vmem:[%s3] sm:$0xff]
    %v257 = vld [vmem:[%s3 + $0x8] sm:$0xff]
    %v258 = vld [vmem:[%s3 + $0x10] sm:$0xff]
    %v259 = vld [vmem:[%s3 + $0x18] sm:$0xff]
    %260 = vmatprep.subr.mxu0 0.0
    %261 = vmatpush1.msra.mxu0 %v256
    %262 = vmatprep.subr.mxu0 0.0
    %263 = vmatpush1.msra.mxu0 %v257
    %264 = vmatprep.subr.mxu0 0.0
    %265 = vmatpush1.msra.mxu0 %v258
    %266 = vmatprep.subr.mxu0 0.0
    %267 = vmatpush1.msra.mxu0 %v259
    %268 = vmatprep.subr.mxu0 0.0
    %269 = vmatpush1.msra.mxu0 0.0
    %270 = vmatprep.subr.mxu0 0.0
    %271 = vmatpush1.msra.mxu0 0.0
    %272 = vmatprep.subr.mxu0 0.0
    %273 = vmatpush1.msra.mxu0 0.0
    %274 = vmatprep.subr.mxu0 0.0
    %275 = vmatpush1.msra.mxu0 0.0
    %276 = vmatprep.subr.mxu0 0.0
    %277 = vmatpush1.msra.mxu0 0.0
    %278 = vmatprep.subr.mxu0 0.0
    %279 = vmatpush1.msra.mxu0 0.0
    %280 = vmatprep.subr.mxu0 0.0
    %281 = vmatpush1.msra.mxu0 0.0
    %282 = vmatprep.subr.mxu0 0.0
    %283 = vmatpush1.msra.mxu0 0.0
    %284 = vmatprep.subr.mxu0 0.0
    %285 = vmatpush1.msra.mxu0 0.0
    %286 = vmatprep.subr.mxu0 0.0
    %287 = vmatpush1.msra.mxu0 0.0
    %288 = vmatprep.subr.mxu0 0.0
    %289 = vmatpush1.msra.mxu0 0.0
    %290 = vmatprep.subr.mxu0 0.0
    %291 = vmatpush1.msra.mxu0 0.0
    %292 = vmatprep.subr.mxu0 0.0
    %293 = vmatpush1.msra.mxu0 0.0
    %294 = vmatprep.subr.mxu0 0.0
    %295 = vmatpush1.msra.mxu0 0.0
    %296 = vmatprep.subr.mxu0 0.0
    %297 = vmatpush1.msra.mxu0 0.0
    %298 = vmatprep.subr.mxu0 0.0
    %299 = vmatpush1.msra.mxu0 0.0
    %300 = vmatprep.subr.mxu0 0.0
    %301 = vmatpush1.msra.mxu0 0.0
    %302 = vmatprep.subr.mxu0 0.0
    %303 = vmatpush1.msra.mxu0 0.0
    %304 = vmatprep.subr.mxu0 0.0
    %305 = vmatpush1.msra.mxu0 0.0
    %306 = vmatprep.subr.mxu0 0.0
    %307 = vmatpush1.msra.mxu0 0.0
    %308 = vmatprep.subr.mxu0 0.0
    %309 = vmatpush1.msra.mxu0 0.0
    %310 = vmatprep.subr.mxu0 0.0
    %311 = vmatpush1.msra.mxu0 0.0
    %312 = vmatprep.subr.mxu0 0.0
    %313 = vmatpush1.msra.mxu0 0.0
    %314 = vmatprep.subr.mxu0 0.0
    %315 = vmatpush1.msra.mxu0 0.0
    %316 = vmatprep.subr.mxu0 0.0
    %317 = vmatpush1.msra.mxu0 0.0
    %318 = vmatprep.subr.mxu0 0.0
    %319 = vmatpush1.msra.mxu0 0.0
    %320 = vmatprep.subr.mxu0 0.0
    %321 = vmatpush1.msra.mxu0 0.0
    %322 = vmatprep.subr.mxu0 0.0
    %323 = vmatpush1.msra.mxu0 0.0
    %324 = vmatprep.mubr.f32.mxu0 0.0
    %325 = vmatmul.mubr.f32.gmra.mrb[0].mxu0 %v97
    %v326 = vpop.f32.mrb[0].mxu0
    %v327 = vadd.f32 0.0, %v326
    %v328 = vpop.f32.mrb[0].mxu0
    %329 = vmatprep.mubr.f32.mxu0 0.0
    %330 = vmatmul.mubr.f32.gmra.mrb[0].mxu0 %v100
    %v331 = vpop.f32.mrb[0].mxu0
    %v332 = vadd.f32 0.0, %v331
    %v333 = vpop.f32.mrb[0].mxu0
    %334 = vdwg.mxu0
    %v335 = vmul.f32 %v169, 0.35355338
    %v336 = vmul.f32 %v174, 0.35355338
    %v337 = vld [vmem:[%s5] sm:$0xff]
    %v338 = vld [vmem:[%s5 + $0x8] sm:$0xff]
    %vm339 = vcmask 64512
    %v341 = vsel %vm339, %v335, 0
    %v344 = vsel %vm339, %v336, 0
    %v347 = vsel %vm339, %v248, 0
    %v350 = vsel %vm339, %v253, 0
    %352 = vmatprep.subr.mxu0 0.0
    %353 = vmatpush1.xpose.msra.mxu0 %v347
    %354 = vmatprep.subr.mxu0 0.0
    %355 = vmatpush1.xpose.msra.mxu0 %v350
    %356 = vmatprep.subr.mxu0 0.0
    %357 = vmatpush1.xpose.msra.mxu0 0.0
    %358 = vmatprep.subr.mxu0 0.0
    %359 = vmatpush1.xpose.msra.mxu0 0.0
    %360 = vmatprep.subr.mxu0 0.0
    %361 = vmatpush1.xpose.msra.mxu0 0.0
    %362 = vmatprep.subr.mxu0 0.0
    %363 = vmatpush1.xpose.msra.mxu0 0.0
    %364 = vmatprep.subr.mxu0 0.0
    %365 = vmatpush1.xpose.msra.mxu0 0.0
    %366 = vmatprep.subr.mxu0 0.0
    %367 = vmatpush1.xpose.msra.mxu0 0.0
    %368 = vmatprep.subr.mxu0 0.0
    %369 = vmatpush1.xpose.msra.mxu0 0.0
    %370 = vmatprep.subr.mxu0 0.0
    %371 = vmatpush1.xpose.msra.mxu0 0.0
    %372 = vmatprep.subr.mxu0 0.0
    %373 = vmatpush1.xpose.msra.mxu0 0.0
    %374 = vmatprep.subr.mxu0 0.0
    %375 = vmatpush1.xpose.msra.mxu0 0.0
    %376 = vmatprep.subr.mxu0 0.0
    %377 = vmatpush1.xpose.msra.mxu0 0.0
    %378 = vmatprep.subr.mxu0 0.0
    %379 = vmatpush1.xpose.msra.mxu0 0.0
    %380 = vmatprep.subr.mxu0 0.0
    %381 = vmatpush1.xpose.msra.mxu0 0.0
    %382 = vmatprep.subr.mxu0 0.0
    %383 = vmatpush1.xpose.msra.mxu0 0.0
    %384 = vmatprep.subr.mxu0 0.0
    %385 = vmatpush1.xpose.msra.mxu0 0.0
    %386 = vmatprep.subr.mxu0 0.0
    %387 = vmatpush1.xpose.msra.mxu0 0.0
    %388 = vmatprep.subr.mxu0 0.0
    %389 = vmatpush1.xpose.msra.mxu0 0.0
    %390 = vmatprep.subr.mxu0 0.0
    %391 = vmatpush1.xpose.msra.mxu0 0.0
    %392 = vmatprep.subr.mxu0 0.0
    %393 = vmatpush1.xpose.msra.mxu0 0.0
    %394 = vmatprep.subr.mxu0 0.0
    %395 = vmatpush1.xpose.msra.mxu0 0.0
    %396 = vmatprep.subr.mxu0 0.0
    %397 = vmatpush1.xpose.msra.mxu0 0.0
    %398 = vmatprep.subr.mxu0 0.0
    %399 = vmatpush1.xpose.msra.mxu0 0.0
    %400 = vmatprep.subr.mxu0 0.0
    %401 = vmatpush1.xpose.msra.mxu0 0.0
    %402 = vmatprep.subr.mxu0 0.0
    %403 = vmatpush1.xpose.msra.mxu0 0.0
    %404 = vmatprep.subr.mxu0 0.0
    %405 = vmatpush1.xpose.msra.mxu0 0.0
    %406 = vmatprep.subr.mxu0 0.0
    %407 = vmatpush1.xpose.msra.mxu0 0.0
    %408 = vmatprep.subr.mxu0 0.0
    %409 = vmatpush1.xpose.msra.mxu0 0.0
    %410 = vmatprep.subr.mxu0 0.0
    %411 = vmatpush1.xpose.msra.mxu0 0.0
    %412 = vmatprep.subr.mxu0 0.0
    %413 = vmatpush1.xpose.msra.mxu0 0.0
    %414 = vmatprep.subr.mxu0 0.0
    %415 = vmatpush1.xpose.msra.mxu0 0.0
    %416 = vmatprep.mubr.f32.mxu0 0.0
    %417 = vmatmul.mubr.f32.gmra.mrb[0].mxu0 %v341
    %v418 = vpop.f32.mrb[0].mxu0
    %v419 = vadd.f32 %v337, %v418
    %v420 = vpop.f32.mrb[0].mxu0
    %421 = vmatprep.mubr.f32.mxu0 0.0
    %422 = vmatmul.mubr.f32.gmra.mrb[0].mxu0 %v344
    %v423 = vpop.f32.mrb[0].mxu0
    %v424 = vadd.f32 %v338, %v423
    %v425 = vpop.f32.mrb[0].mxu0
    %426 = vdwg.mxu0
    %vm427 = vcmask 130048
    %v428 = vsel %vm427, %v419, -inf
    %429 = vmax.xlane.f32.xlu0 %v428
    %v430 = vpop.xlane.xlu0 %429
    %v431 = vsel %vm427, %v424, -inf
    %432 = vmax.xlane.f32.xlu0 %v431
    %v433 = vpop.xlane.xlu0 %432
    %v434 = vsub.f32 %v419, %v430
    %v435 = vsub.f32 %v424, %v433
    %v436 = vmul.f32 %v434, 1.442695
    %v437 = vpow.pop %v436
    %v438 = vmul.f32 %v435, 1.442695
    %v439 = vpow.pop %v438
    %v440 = vsel %vm427, %v437, 0.0
    %441 = vadd.xlane.f32.xlu0 %v440
    %v442 = vpop.xlane.xlu0 %441
    %v443 = vsel %vm427, %v439, 0.0
    %444 = vadd.xlane.f32.xlu0 %v443
    %v445 = vpop.xlane.xlu0 %444
    %v446 = vrcp.pop %v442
    %v447 = vrcp.pop %v445
    %v448 = vmul.f32 %v437, %v446
    %v449 = vmul.f32 %v439, %v447
    %v451 = vsel %vm427, %v448, 0
    %v454 = vsel %vm427, %v449, 0
    %456 = vmatprep.subr.mxu0 0.0
    %457 = vmatpush1.msra.mxu0 %v327
    %458 = vmatprep.subr.mxu0 0.0
    %459 = vmatpush1.msra.mxu0 %v332
    %460 = vmatprep.subr.mxu0 0.0
    %461 = vmatpush1.msra.mxu0 0.0
    %462 = vmatprep.subr.mxu0 0.0
    %463 = vmatpush1.msra.mxu0 0.0
    %464 = vmatprep.subr.mxu0 0.0
    %465 = vmatpush1.msra.mxu0 0.0
    %466 = vmatprep.subr.mxu0 0.0
    %467 = vmatpush1.msra.mxu0 0.0
    %468 = vmatprep.subr.mxu0 0.0
    %469 = vmatpush1.msra.mxu0 0.0
    %470 = vmatprep.subr.mxu0 0.0
    %471 = vmatpush1.msra.mxu0 0.0
    %472 = vmatprep.subr.mxu0 0.0
    %473 = vmatpush1.msra.mxu0 0.0
    %474 = vmatprep.subr.mxu0 0.0
    %475 = vmatpush1.msra.mxu0 0.0
    %476 = vmatprep.subr.mxu0 0.0
    %477 = vmatpush1.msra.mxu0 0.0
    %478 = vmatprep.subr.mxu0 0.0
    %479 = vmatpush1.msra.mxu0 0.0
    %480 = vmatprep.subr.mxu0 0.0
    %481 = vmatpush1.msra.mxu0 0.0
    %482 = vmatprep.subr.mxu0 0.0
    %483 = vmatpush1.msra.mxu0 0.0
    %484 = vmatprep.subr.mxu0 0.0
    %485 = vmatpush1.msra.mxu0 0.0
    %486 = vmatprep.subr.mxu0 0.0
    %487 = vmatpush1.msra.mxu0 0.0
    %488 = vmatprep.subr.mxu0 0.0
    %489 = vmatpush1.msra.mxu0 0.0
    %490 = vmatprep.subr.mxu0 0.0
    %491 = vmatpush1.msra.mxu0 0.0
    %492 = vmatprep.subr.mxu0 0.0
    %493 = vmatpush1.msra.mxu0 0.0
    %494 = vmatprep.subr.mxu0 0.0
    %495 = vmatpush1.msra.mxu0 0.0
    %496 = vmatprep.subr.mxu0 0.0
    %497 = vmatpush1.msra.mxu0 0.0
    %498 = vmatprep.subr.mxu0 0.0
    %499 = vmatpush1.msra.mxu0 0.0
    %500 = vmatprep.subr.mxu0 0.0
    %501 = vmatpush1.msra.mxu0 0.0
    %502 = vmatprep.subr.mxu0 0.0
    %503 = vmatpush1.msra.mxu0 0.0
    %504 = vmatprep.subr.mxu0 0.0
    %505 = vmatpush1.msra.mxu0 0.0
    %506 = vmatprep.subr.mxu0 0.0
    %507 = vmatpush1.msra.mxu0 0.0
    %508 = vmatprep.subr.mxu0 0.0
    %509 = vmatpush1.msra.mxu0 0.0
    %510 = vmatprep.subr.mxu0 0.0
    %511 = vmatpush1.msra.mxu0 0.0
    %512 = vmatprep.subr.mxu0 0.0
    %513 = vmatpush1.msra.mxu0 0.0
    %514 = vmatprep.subr.mxu0 0.0
    %515 = vmatpush1.msra.mxu0 0.0
    %516 = vmatprep.subr.mxu0 0.0
    %517 = vmatpush1.msra.mxu0 0.0
    %518 = vmatprep.subr.mxu0 0.0
    %519 = vmatpush1.msra.mxu0 0.0
    %520 = vmatprep.mubr.f32.mxu0 0.0
    %521 = vmatmul.mubr.f32.gmra.mrb[0].mxu0 %v451
    %v522 = vpop.f32.mrb[0].mxu0
    %v523 = vadd.f32 0.0, %v522
    %v524 = vpop.f32.mrb[0].mxu0
    %525 = vmatprep.mubr.f32.mxu0 0.0
    %526 = vmatmul.mubr.f32.gmra.mrb[0].mxu0 %v454
    %v527 = vpop.f32.mrb[0].mxu0
    %v528 = vadd.f32 0.0, %v527
    %v529 = vpop.f32.mrb[0].mxu0
    %530 = vdwg.mxu0
    %531 = vrot.lane.b32.xlu0 %v335, 120
    %v532 = vpop.permute.xlu0 %531
    %533 = vrot.lane.b32.xlu0 %v336, 120
    %v534 = vpop.permute.xlu0 %533
    %535 = vrot.lane.b32.xlu0 %v248, 120
    %v536 = vpop.permute.xlu0 %535
    %537 = vrot.lane.b32.xlu0 %v253, 120
    %v538 = vpop.permute.xlu0 %537
    %v539 = vsel %vm339, %v532, 0
    %v541 = vsel %vm339, %v534, 0
    %v543 = vsel %vm339, %v536, 0
    %v545 = vsel %vm339, %v538, 0
    %547 = vmatprep.subr.mxu0 0.0
    %548 = vmatpush1.xpose.msra.mxu0 %v543
    %549 = vmatprep.subr.mxu0 0.0
    %550 = vmatpush1.xpose.msra.mxu0 %v545
    %551 = vmatprep.subr.mxu0 0.0
    %552 = vmatpush1.xpose.msra.mxu0 0.0
    %553 = vmatprep.subr.mxu0 0.0
    %554 = vmatpush1.xpose.msra.mxu0 0.0
    %555 = vmatprep.subr.mxu0 0.0
    %556 = vmatpush1.xpose.msra.mxu0 0.0
    %557 = vmatprep.subr.mxu0 0.0
    %558 = vmatpush1.xpose.msra.mxu0 0.0
    %559 = vmatprep.subr.mxu0 0.0
    %560 = vmatpush1.xpose.msra.mxu0 0.0
    %561 = vmatprep.subr.mxu0 0.0
    %562 = vmatpush1.xpose.msra.mxu0 0.0
    %563 = vmatprep.subr.mxu0 0.0
    %564 = vmatpush1.xpose.msra.mxu0 0.0
    %565 = vmatprep.subr.mxu0 0.0
    %566 = vmatpush1.xpose.msra.mxu0 0.0
    %567 = vmatprep.subr.mxu0 0.0
    %568 = vmatpush1.xpose.msra.mxu0 0.0
    %569 = vmatprep.subr.mxu0 0.0
    %570 = vmatpush1.xpose.msra.mxu0 0.0
    %571 = vmatprep.subr.mxu0 0.0
    %572 = vmatpush1.xpose.msra.mxu0 0.0
    %573 = vmatprep.subr.mxu0 0.0
    %574 = vmatpush1.xpose.msra.mxu0 0.0
    %575 = vmatprep.subr.mxu0 0.0
    %576 = vmatpush1.xpose.msra.mxu0 0.0
    %577 = vmatprep.subr.mxu0 0.0
    %578 = vmatpush1.xpose.msra.mxu0 0.0
    %579 = vmatprep.subr.mxu0 0.0
    %580 = vmatpush1.xpose.msra.mxu0 0.0
    %581 = vmatprep.subr.mxu0 0.0
    %582 = vmatpush1.xpose.msra.mxu0 0.0
    %583 = vmatprep.subr.mxu0 0.0
    %584 = vmatpush1.xpose.msra.mxu0 0.0
    %585 = vmatprep.subr.mxu0 0.0
    %586 = vmatpush1.xpose.msra.mxu0 0.0
    %587 = vmatprep.subr.mxu0 0.0
    %588 = vmatpush1.xpose.msra.mxu0 0.0
    %589 = vmatprep.subr.mxu0 0.0
    %590 = vmatpush1.xpose.msra.mxu0 0.0
    %591 = vmatprep.subr.mxu0 0.0
    %592 = vmatpush1.xpose.msra.mxu0 0.0
    %593 = vmatprep.subr.mxu0 0.0
    %594 = vmatpush1.xpose.msra.mxu0 0.0
    %595 = vmatprep.subr.mxu0 0.0
    %596 = vmatpush1.xpose.msra.mxu0 0.0
    %597 = vmatprep.subr.mxu0 0.0
    %598 = vmatpush1.xpose.msra.mxu0 0.0
    %599 = vmatprep.subr.mxu0 0.0
    %600 = vmatpush1.xpose.msra.mxu0 0.0
    %601 = vmatprep.subr.mxu0 0.0
    %602 = vmatpush1.xpose.msra.mxu0 0.0
    %603 = vmatprep.subr.mxu0 0.0
    %604 = vmatpush1.xpose.msra.mxu0 0.0
    %605 = vmatprep.subr.mxu0 0.0
    %606 = vmatpush1.xpose.msra.mxu0 0.0
    %607 = vmatprep.subr.mxu0 0.0
    %608 = vmatpush1.xpose.msra.mxu0 0.0
    %609 = vmatprep.subr.mxu0 0.0
    %610 = vmatpush1.xpose.msra.mxu0 0.0
    %611 = vmatprep.mubr.f32.mxu0 0.0
    %612 = vmatmul.mubr.f32.gmra.mrb[0].mxu0 %v539
    %v613 = vpop.f32.mrb[0].mxu0
    %v614 = vadd.f32 %v337, %v613
    %v615 = vpop.f32.mrb[0].mxu0
    %616 = vmatprep.mubr.f32.mxu0 0.0
    %617 = vmatmul.mubr.f32.gmra.mrb[0].mxu0 %v541
    %v618 = vpop.f32.mrb[0].mxu0
    %v619 = vadd.f32 %v338, %v618
    %v620 = vpop.f32.mrb[0].mxu0
    %621 = vdwg.mxu0
    %v622 = vsel %vm427, %v614, -inf
    %623 = vmax.xlane.f32.xlu0 %v622
    %v624 = vpop.xlane.xlu0 %623
    %v625 = vsel %vm427, %v619, -inf
    %626 = vmax.xlane.f32.xlu0 %v625
    %v627 = vpop.xlane.xlu0 %626
    %v628 = vsub.f32 %v614, %v624
    %v629 = vsub.f32 %v619, %v627
    %v630 = vmul.f32 %v628, 1.442695
    %v631 = vpow.pop %v630
    %v632 = vmul.f32 %v629, 1.442695
    %v633 = vpow.pop %v632
    %v634 = vsel %vm427, %v631, 0.0
    %635 = vadd.xlane.f32.xlu0 %v634
    %v636 = vpop.xlane.xlu0 %635
    %v637 = vsel %vm427, %v633, 0.0
    %638 = vadd.xlane.f32.xlu0 %v637
    %v639 = vpop.xlane.xlu0 %638
    %v640 = vrcp.pop %v636
    %v641 = vrcp.pop %v639
    %v642 = vmul.f32 %v631, %v640
    %v643 = vmul.f32 %v633, %v641
    %646 = vrot.lane.b32.xlu0 %v327, 120
    %v647 = vpop.permute.xlu0 %646
    %648 = vrot.lane.b32.xlu0 %v332, 120
    %v649 = vpop.permute.xlu0 %648
    %v653 = vsel %vm427, %v642, 0
    %v656 = vsel %vm427, %v643, 0
    %658 = vmatprep.subr.mxu0 0.0
    %659 = vmatpush1.msra.mxu0 %v647
    %660 = vmatprep.subr.mxu0 0.0
    %661 = vmatpush1.msra.mxu0 %v649
    %662 = vmatprep.subr.mxu0 0.0
    %663 = vmatpush1.msra.mxu0 0.0
    %664 = vmatprep.subr.mxu0 0.0
    %665 = vmatpush1.msra.mxu0 0.0
    %666 = vmatprep.subr.mxu0 0.0
    %667 = vmatpush1.msra.mxu0 0.0
    %668 = vmatprep.subr.mxu0 0.0
    %669 = vmatpush1.msra.mxu0 0.0
    %670 = vmatprep.subr.mxu0 0.0
    %671 = vmatpush1.msra.mxu0 0.0
    %672 = vmatprep.subr.mxu0 0.0
    %673 = vmatpush1.msra.mxu0 0.0
    %674 = vmatprep.subr.mxu0 0.0
    %675 = vmatpush1.msra.mxu0 0.0
    %676 = vmatprep.subr.mxu0 0.0
    %677 = vmatpush1.msra.mxu0 0.0
    %678 = vmatprep.subr.mxu0 0.0
    %679 = vmatpush1.msra.mxu0 0.0
    %680 = vmatprep.subr.mxu0 0.0
    %681 = vmatpush1.msra.mxu0 0.0
    %682 = vmatprep.subr.mxu0 0.0
    %683 = vmatpush1.msra.mxu0 0.0
    %684 = vmatprep.subr.mxu0 0.0
    %685 = vmatpush1.msra.mxu0 0.0
    %686 = vmatprep.subr.mxu0 0.0
    %687 = vmatpush1.msra.mxu0 0.0
    %688 = vmatprep.subr.mxu0 0.0
    %689 = vmatpush1.msra.mxu0 0.0
    %690 = vmatprep.subr.mxu0 0.0
    %691 = vmatpush1.msra.mxu0 0.0
    %692 = vmatprep.subr.mxu0 0.0
    %693 = vmatpush1.msra.mxu0 0.0
    %694 = vmatprep.subr.mxu0 0.0
    %695 = vmatpush1.msra.mxu0 0.0
    %696 = vmatprep.subr.mxu0 0.0
    %697 = vmatpush1.msra.mxu0 0.0
    %698 = vmatprep.subr.mxu0 0.0
    %699 = vmatpush1.msra.mxu0 0.0
    %700 = vmatprep.subr.mxu0 0.0
    %701 = vmatpush1.msra.mxu0 0.0
    %702 = vmatprep.subr.mxu0 0.0
    %703 = vmatpush1.msra.mxu0 0.0
    %704 = vmatprep.subr.mxu0 0.0
    %705 = vmatpush1.msra.mxu0 0.0
    %706 = vmatprep.subr.mxu0 0.0
    %707 = vmatpush1.msra.mxu0 0.0
    %708 = vmatprep.subr.mxu0 0.0
    %709 = vmatpush1.msra.mxu0 0.0
    %710 = vmatprep.subr.mxu0 0.0
    %711 = vmatpush1.msra.mxu0 0.0
    %712 = vmatprep.subr.mxu0 0.0
    %713 = vmatpush1.msra.mxu0 0.0
    %714 = vmatprep.subr.mxu0 0.0
    %715 = vmatpush1.msra.mxu0 0.0
    %716 = vmatprep.subr.mxu0 0.0
    %717 = vmatpush1.msra.mxu0 0.0
    %718 = vmatprep.subr.mxu0 0.0
    %719 = vmatpush1.msra.mxu0 0.0
    %720 = vmatprep.subr.mxu0 0.0
    %721 = vmatpush1.msra.mxu0 0.0
    %722 = vmatprep.mubr.f32.mxu0 0.0
    %723 = vmatmul.mubr.f32.gmra.mrb[0].mxu0 %v653
    %v724 = vpop.f32.mrb[0].mxu0
    %v725 = vadd.f32 0.0, %v724
    %v726 = vpop.f32.mrb[0].mxu0
    %727 = vmatprep.mubr.f32.mxu0 0.0
    %728 = vmatmul.mubr.f32.gmra.mrb[0].mxu0 %v656
    %v729 = vpop.f32.mrb[0].mxu0
    %v730 = vadd.f32 0.0, %v729
    %v731 = vpop.f32.mrb[0].mxu0
    %732 = vdwg.mxu0
    %733 = vrot.lane.b32.xlu0 %v335, 112
    %v734 = vpop.permute.xlu0 %733
    %735 = vrot.lane.b32.xlu0 %v336, 112
    %v736 = vpop.permute.xlu0 %735
    %737 = vrot.lane.b32.xlu0 %v248, 112
    %v738 = vpop.permute.xlu0 %737
    %739 = vrot.lane.b32.xlu0 %v253, 112
    %v740 = vpop.permute.xlu0 %739
    %v741 = vsel %vm339, %v734, 0
    %v743 = vsel %vm339, %v736, 0
    %v745 = vsel %vm339, %v738, 0
    %v747 = vsel %vm339, %v740, 0
    %749 = vmatprep.subr.mxu0 0.0
    %750 = vmatpush1.xpose.msra.mxu0 %v745
    %751 = vmatprep.subr.mxu0 0.0
    %752 = vmatpush1.xpose.msra.mxu0 %v747
    %753 = vmatprep.subr.mxu0 0.0
    %754 = vmatpush1.xpose.msra.mxu0 0.0
    %755 = vmatprep.subr.mxu0 0.0
    %756 = vmatpush1.xpose.msra.mxu0 0.0
    %757 = vmatprep.subr.mxu0 0.0
    %758 = vmatpush1.xpose.msra.mxu0 0.0
    %759 = vmatprep.subr.mxu0 0.0
    %760 = vmatpush1.xpose.msra.mxu0 0.0
    %761 = vmatprep.subr.mxu0 0.0
    %762 = vmatpush1.xpose.msra.mxu0 0.0
    %763 = vmatprep.subr.mxu0 0.0
    %764 = vmatpush1.xpose.msra.mxu0 0.0
    %765 = vmatprep.subr.mxu0 0.0
    %766 = vmatpush1.xpose.msra.mxu0 0.0
    %767 = vmatprep.subr.mxu0 0.0
    %768 = vmatpush1.xpose.msra.mxu0 0.0
    %769 = vmatprep.subr.mxu0 0.0
    %770 = vmatpush1.xpose.msra.mxu0 0.0
    %771 = vmatprep.subr.mxu0 0.0
    %772 = vmatpush1.xpose.msra.mxu0 0.0
    %773 = vmatprep.subr.mxu0 0.0
    %774 = vmatpush1.xpose.msra.mxu0 0.0
    %775 = vmatprep.subr.mxu0 0.0
    %776 = vmatpush1.xpose.msra.mxu0 0.0
    %777 = vmatprep.subr.mxu0 0.0
    %778 = vmatpush1.xpose.msra.mxu0 0.0
    %779 = vmatprep.subr.mxu0 0.0
    %780 = vmatpush1.xpose.msra.mxu0 0.0
    %781 = vmatprep.subr.mxu0 0.0
    %782 = vmatpush1.xpose.msra.mxu0 0.0
    %783 = vmatprep.subr.mxu0 0.0
    %784 = vmatpush1.xpose.msra.mxu0 0.0
    %785 = vmatprep.subr.mxu0 0.0
    %786 = vmatpush1.xpose.msra.mxu0 0.0
    %787 = vmatprep.subr.mxu0 0.0
    %788 = vmatpush1.xpose.msra.mxu0 0.0
    %789 = vmatprep.subr.mxu0 0.0
    %790 = vmatpush1.xpose.msra.mxu0 0.0
    %791 = vmatprep.subr.mxu0 0.0
    %792 = vmatpush1.xpose.msra.mxu0 0.0
    %793 = vmatprep.subr.mxu0 0.0
    %794 = vmatpush1.xpose.msra.mxu0 0.0
    %795 = vmatprep.subr.mxu0 0.0
    %796 = vmatpush1.xpose.msra.mxu0 0.0
    %797 = vmatprep.subr.mxu0 0.0
    %798 = vmatpush1.xpose.msra.mxu0 0.0
    %799 = vmatprep.subr.mxu0 0.0
    %800 = vmatpush1.xpose.msra.mxu0 0.0
    %801 = vmatprep.subr.mxu0 0.0
    %802 = vmatpush1.xpose.msra.mxu0 0.0
    %803 = vmatprep.subr.mxu0 0.0
    %804 = vmatpush1.xpose.msra.mxu0 0.0
    %805 = vmatprep.subr.mxu0 0.0
    %806 = vmatpush1.xpose.msra.mxu0 0.0
    %807 = vmatprep.subr.mxu0 0.0
    %808 = vmatpush1.xpose.msra.mxu0 0.0
    %809 = vmatprep.subr.mxu0 0.0
    %810 = vmatpush1.xpose.msra.mxu0 0.0
    %811 = vmatprep.subr.mxu0 0.0
    %812 = vmatpush1.xpose.msra.mxu0 0.0
    %813 = vmatprep.mubr.f32.mxu0 0.0
    %814 = vmatmul.mubr.f32.gmra.mrb[0].mxu0 %v741
    %v815 = vpop.f32.mrb[0].mxu0
    %v816 = vadd.f32 %v337, %v815
    %v817 = vpop.f32.mrb[0].mxu0
    %818 = vmatprep.mubr.f32.mxu0 0.0
    %819 = vmatmul.mubr.f32.gmra.mrb[0].mxu0 %v743
    %v820 = vpop.f32.mrb[0].mxu0
    %v821 = vadd.f32 %v338, %v820
    %v822 = vpop.f32.mrb[0].mxu0
    %823 = vdwg.mxu0
    %v824 = vsel %vm427, %v816, -inf
    %825 = vmax.xlane.f32.xlu0 %v824
    %v826 = vpop.xlane.xlu0 %825
    %v827 = vsel %vm427, %v821, -inf
    %828 = vmax.xlane.f32.xlu0 %v827
    %v829 = vpop.xlane.xlu0 %828
    %v830 = vsub.f32 %v816, %v826
    %v831 = vsub.f32 %v821, %v829
    %v832 = vmul.f32 %v830, 1.442695
    %v833 = vpow.pop %v832
    %v834 = vmul.f32 %v831, 1.442695
    %v835 = vpow.pop %v834
    %v836 = vsel %vm427, %v833, 0.0
    %837 = vadd.xlane.f32.xlu0 %v836
    %v838 = vpop.xlane.xlu0 %837
    %v839 = vsel %vm427, %v835, 0.0
    %840 = vadd.xlane.f32.xlu0 %v839
    %v841 = vpop.xlane.xlu0 %840
    %v842 = vrcp.pop %v838
    %v843 = vrcp.pop %v841
    %v844 = vmul.f32 %v833, %v842
    %v845 = vmul.f32 %v835, %v843
    %846 = vrot.lane.b32.xlu0 %v327, 112
    %v847 = vpop.permute.xlu0 %846
    %848 = vrot.lane.b32.xlu0 %v332, 112
    %v849 = vpop.permute.xlu0 %848
    %v853 = vsel %vm427, %v844, 0
    %v856 = vsel %vm427, %v845, 0
    %858 = vmatprep.subr.mxu0 0.0
    %859 = vmatpush1.msra.mxu0 %v847
    %860 = vmatprep.subr.mxu0 0.0
    %861 = vmatpush1.msra.mxu0 %v849
    %862 = vmatprep.subr.mxu0 0.0
    %863 = vmatpush1.msra.mxu0 0.0
    %864 = vmatprep.subr.mxu0 0.0
    %865 = vmatpush1.msra.mxu0 0.0
    %866 = vmatprep.subr.mxu0 0.0
    %867 = vmatpush1.msra.mxu0 0.0
    %868 = vmatprep.subr.mxu0 0.0
    %869 = vmatpush1.msra.mxu0 0.0
    %870 = vmatprep.subr.mxu0 0.0
    %871 = vmatpush1.msra.mxu0 0.0
    %872 = vmatprep.subr.mxu0 0.0
    %873 = vmatpush1.msra.mxu0 0.0
    %874 = vmatprep.subr.mxu0 0.0
    %875 = vmatpush1.msra.mxu0 0.0
    %876 = vmatprep.subr.mxu0 0.0
    %877 = vmatpush1.msra.mxu0 0.0
    %878 = vmatprep.subr.mxu0 0.0
    %879 = vmatpush1.msra.mxu0 0.0
    %880 = vmatprep.subr.mxu0 0.0
    %881 = vmatpush1.msra.mxu0 0.0
    %882 = vmatprep.subr.mxu0 0.0
    %883 = vmatpush1.msra.mxu0 0.0
    %884 = vmatprep.subr.mxu0 0.0
    %885 = vmatpush1.msra.mxu0 0.0
    %886 = vmatprep.subr.mxu0 0.0
    %887 = vmatpush1.msra.mxu0 0.0
    %888 = vmatprep.subr.mxu0 0.0
    %889 = vmatpush1.msra.mxu0 0.0
    %890 = vmatprep.subr.mxu0 0.0
    %891 = vmatpush1.msra.mxu0 0.0
    %892 = vmatprep.subr.mxu0 0.0
    %893 = vmatpush1.msra.mxu0 0.0
    %894 = vmatprep.subr.mxu0 0.0
    %895 = vmatpush1.msra.mxu0 0.0
    %896 = vmatprep.subr.mxu0 0.0
    %897 = vmatpush1.msra.mxu0 0.0
    %898 = vmatprep.subr.mxu0 0.0
    %899 = vmatpush1.msra.mxu0 0.0
    %900 = vmatprep.subr.mxu0 0.0
    %901 = vmatpush1.msra.mxu0 0.0
    %902 = vmatprep.subr.mxu0 0.0
    %903 = vmatpush1.msra.mxu0 0.0
    %904 = vmatprep.subr.mxu0 0.0
    %905 = vmatpush1.msra.mxu0 0.0
    %906 = vmatprep.subr.mxu0 0.0
    %907 = vmatpush1.msra.mxu0 0.0
    %908 = vmatprep.subr.mxu0 0.0
    %909 = vmatpush1.msra.mxu0 0.0
    %910 = vmatprep.subr.mxu0 0.0
    %911 = vmatpush1.msra.mxu0 0.0
    %912 = vmatprep.subr.mxu0 0.0
    %913 = vmatpush1.msra.mxu0 0.0
    %914 = vmatprep.subr.mxu0 0.0
    %915 = vmatpush1.msra.mxu0 0.0
    %916 = vmatprep.subr.mxu0 0.0
    %917 = vmatpush1.msra.mxu0 0.0
    %918 = vmatprep.subr.mxu0 0.0
    %919 = vmatpush1.msra.mxu0 0.0
    %920 = vmatprep.subr.mxu0 0.0
    %921 = vmatpush1.msra.mxu0 0.0
    %922 = vmatprep.mubr.f32.mxu0 0.0
    %923 = vmatmul.mubr.f32.gmra.mrb[0].mxu0 %v853
    %v924 = vpop.f32.mrb[0].mxu0
    %v925 = vadd.f32 0.0, %v924
    %v926 = vpop.f32.mrb[0].mxu0
    %927 = vmatprep.mubr.f32.mxu0 0.0
    %928 = vmatmul.mubr.f32.gmra.mrb[0].mxu0 %v856
    %v929 = vpop.f32.mrb[0].mxu0
    %v930 = vadd.f32 0.0, %v929
    %v931 = vpop.f32.mrb[0].mxu0
    %932 = vdwg.mxu0
    %933 = vrot.lane.b32.xlu0 %v335, 104
    %v934 = vpop.permute.xlu0 %933
    %935 = vrot.lane.b32.xlu0 %v336, 104
    %v936 = vpop.permute.xlu0 %935
    %937 = vrot.lane.b32.xlu0 %v248, 104
    %v938 = vpop.permute.xlu0 %937
    %939 = vrot.lane.b32.xlu0 %v253, 104
    %v940 = vpop.permute.xlu0 %939
    %v941 = vsel %vm339, %v934, 0
    %v943 = vsel %vm339, %v936, 0
    %v945 = vsel %vm339, %v938, 0
    %v947 = vsel %vm339, %v940, 0
    %949 = vmatprep.subr.mxu0 0.0
    %950 = vmatpush1.xpose.msra.mxu0 %v945
    %951 = vmatprep.subr.mxu0 0.0
    %952 = vmatpush1.xpose.msra.mxu0 %v947
    %953 = vmatprep.subr.mxu0 0.0
    %954 = vmatpush1.xpose.msra.mxu0 0.0
    %955 = vmatprep.subr.mxu0 0.0
    %956 = vmatpush1.xpose.msra.mxu0 0.0
    %957 = vmatprep.subr.mxu0 0.0
    %958 = vmatpush1.xpose.msra.mxu0 0.0
    %959 = vmatprep.subr.mxu0 0.0
    %960 = vmatpush1.xpose.msra.mxu0 0.0
    %961 = vmatprep.subr.mxu0 0.0
    %962 = vmatpush1.xpose.msra.mxu0 0.0
    %963 = vmatprep.subr.mxu0 0.0
    %964 = vmatpush1.xpose.msra.mxu0 0.0
    %965 = vmatprep.subr.mxu0 0.0
    %966 = vmatpush1.xpose.msra.mxu0 0.0
    %967 = vmatprep.subr.mxu0 0.0
    %968 = vmatpush1.xpose.msra.mxu0 0.0
    %969 = vmatprep.subr.mxu0 0.0
    %970 = vmatpush1.xpose.msra.mxu0 0.0
    %971 = vmatprep.subr.mxu0 0.0
    %972 = vmatpush1.xpose.msra.mxu0 0.0
    %973 = vmatprep.subr.mxu0 0.0
    %974 = vmatpush1.xpose.msra.mxu0 0.0
    %975 = vmatprep.subr.mxu0 0.0
    %976 = vmatpush1.xpose.msra.mxu0 0.0
    %977 = vmatprep.subr.mxu0 0.0
    %978 = vmatpush1.xpose.msra.mxu0 0.0
    %979 = vmatprep.subr.mxu0 0.0
    %980 = vmatpush1.xpose.msra.mxu0 0.0
    %981 = vmatprep.subr.mxu0 0.0
    %982 = vmatpush1.xpose.msra.mxu0 0.0
    %983 = vmatprep.subr.mxu0 0.0
    %984 = vmatpush1.xpose.msra.mxu0 0.0
    %985 = vmatprep.subr.mxu0 0.0
    %986 = vmatpush1.xpose.msra.mxu0 0.0
    %987 = vmatprep.subr.mxu0 0.0
    %988 = vmatpush1.xpose.msra.mxu0 0.0
    %989 = vmatprep.subr.mxu0 0.0
    %990 = vmatpush1.xpose.msra.mxu0 0.0
    %991 = vmatprep.subr.mxu0 0.0
    %992 = vmatpush1.xpose.msra.mxu0 0.0
    %993 = vmatprep.subr.mxu0 0.0
    %994 = vmatpush1.xpose.msra.mxu0 0.0
    %995 = vmatprep.subr.mxu0 0.0
    %996 = vmatpush1.xpose.msra.mxu0 0.0
    %997 = vmatprep.subr.mxu0 0.0
    %998 = vmatpush1.xpose.msra.mxu0 0.0
    %999 = vmatprep.subr.mxu0 0.0
    %1000 = vmatpush1.xpose.msra.mxu0 0.0
    %1001 = vmatprep.subr.mxu0 0.0
    %1002 = vmatpush1.xpose.msra.mxu0 0.0
    %1003 = vmatprep.subr.mxu0 0.0
    %1004 = vmatpush1.xpose.msra.mxu0 0.0
    %1005 = vmatprep.subr.mxu0 0.0
    %1006 = vmatpush1.xpose.msra.mxu0 0.0
    %1007 = vmatprep.subr.mxu0 0.0
    %1008 = vmatpush1.xpose.msra.mxu0 0.0
    %1009 = vmatprep.subr.mxu0 0.0
    %1010 = vmatpush1.xpose.msra.mxu0 0.0
    %1011 = vmatprep.subr.mxu0 0.0
    %1012 = vmatpush1.xpose.msra.mxu0 0.0
    %1013 = vmatprep.mubr.f32.mxu0 0.0
    %1014 = vmatmul.mubr.f32.gmra.mrb[0].mxu0 %v941
    %v1015 = vpop.f32.mrb[0].mxu0
    %v1016 = vadd.f32 %v337, %v1015
    %v1017 = vpop.f32.mrb[0].mxu0
    %1018 = vmatprep.mubr.f32.mxu0 0.0
    %1019 = vmatmul.mubr.f32.gmra.mrb[0].mxu0 %v943
    %v1020 = vpop.f32.mrb[0].mxu0
    %v1021 = vadd.f32 %v338, %v1020
    %v1022 = vpop.f32.mrb[0].mxu0
    %1023 = vdwg.mxu0
    %v1024 = vsel %vm427, %v1016, -inf
    %1025 = vmax.xlane.f32.xlu0 %v1024
    %v1026 = vpop.xlane.xlu0 %1025
    %v1027 = vsel %vm427, %v1021, -inf
    %1028 = vmax.xlane.f32.xlu0 %v1027
    %v1029 = vpop.xlane.xlu0 %1028
    %v1030 = vsub.f32 %v1016, %v1026
    %v1031 = vsub.f32 %v1021, %v1029
    %v1032 = vmul.f32 %v1030, 1.442695
    %v1033 = vpow.pop %v1032
    %v1034 = vmul.f32 %v1031, 1.442695
    %v1035 = vpow.pop %v1034
    %v1036 = vsel %vm427, %v1033, 0.0
    %1037 = vadd.xlane.f32.xlu0 %v1036
    %v1038 = vpop.xlane.xlu0 %1037
    %v1039 = vsel %vm427, %v1035, 0.0
    %1040 = vadd.xlane.f32.xlu0 %v1039
    %v1041 = vpop.xlane.xlu0 %1040
    %v1042 = vrcp.pop %v1038
    %v1043 = vrcp.pop %v1041
    %v1044 = vmul.f32 %v1033, %v1042
    %v1045 = vmul.f32 %v1035, %v1043
    %1046 = vrot.lane.b32.xlu0 %v327, 104
    %v1047 = vpop.permute.xlu0 %1046
    %1048 = vrot.lane.b32.xlu0 %v332, 104
    %v1049 = vpop.permute.xlu0 %1048
    %v1053 = vsel %vm427, %v1044, 0
    %v1056 = vsel %vm427, %v1045, 0
    %1058 = vmatprep.subr.mxu0 0.0
    %1059 = vmatpush1.msra.mxu0 %v1047
    %1060 = vmatprep.subr.mxu0 0.0
    %1061 = vmatpush1.msra.mxu0 %v1049
    %1062 = vmatprep.subr.mxu0 0.0
    %1063 = vmatpush1.msra.mxu0 0.0
    %1064 = vmatprep.subr.mxu0 0.0
    %1065 = vmatpush1.msra.mxu0 0.0
    %1066 = vmatprep.subr.mxu0 0.0
    %1067 = vmatpush1.msra.mxu0 0.0
    %1068 = vmatprep.subr.mxu0 0.0
    %1069 = vmatpush1.msra.mxu0 0.0
    %1070 = vmatprep.subr.mxu0 0.0
    %1071 = vmatpush1.msra.mxu0 0.0
    %1072 = vmatprep.subr.mxu0 0.0
    %1073 = vmatpush1.msra.mxu0 0.0
    %1074 = vmatprep.subr.mxu0 0.0
    %1075 = vmatpush1.msra.mxu0 0.0
    %1076 = vmatprep.subr.mxu0 0.0
    %1077 = vmatpush1.msra.mxu0 0.0
    %1078 = vmatprep.subr.mxu0 0.0
    %1079 = vmatpush1.msra.mxu0 0.0
    %1080 = vmatprep.subr.mxu0 0.0
    %1081 = vmatpush1.msra.mxu0 0.0
    %1082 = vmatprep.subr.mxu0 0.0
    %1083 = vmatpush1.msra.mxu0 0.0
    %1084 = vmatprep.subr.mxu0 0.0
    %1085 = vmatpush1.msra.mxu0 0.0
    %1086 = vmatprep.subr.mxu0 0.0
    %1087 = vmatpush1.msra.mxu0 0.0
    %1088 = vmatprep.subr.mxu0 0.0
    %1089 = vmatpush1.msra.mxu0 0.0
    %1090 = vmatprep.subr.mxu0 0.0
    %1091 = vmatpush1.msra.mxu0 0.0
    %1092 = vmatprep.subr.mxu0 0.0
    %1093 = vmatpush1.msra.mxu0 0.0
    %1094 = vmatprep.subr.mxu0 0.0
    %1095 = vmatpush1.msra.mxu0 0.0
    %1096 = vmatprep.subr.mxu0 0.0
    %1097 = vmatpush1.msra.mxu0 0.0
    %1098 = vmatprep.subr.mxu0 0.0
    %1099 = vmatpush1.msra.mxu0 0.0
    %1100 = vmatprep.subr.mxu0 0.0
    %1101 = vmatpush1.msra.mxu0 0.0
    %1102 = vmatprep.subr.mxu0 0.0
    %1103 = vmatpush1.msra.mxu0 0.0
    %1104 = vmatprep.subr.mxu0 0.0
    %1105 = vmatpush1.msra.mxu0 0.0
    %1106 = vmatprep.subr.mxu0 0.0
    %1107 = vmatpush1.msra.mxu0 0.0
    %1108 = vmatprep.subr.mxu0 0.0
    %1109 = vmatpush1.msra.mxu0 0.0
    %1110 = vmatprep.subr.mxu0 0.0
    %1111 = vmatpush1.msra.mxu0 0.0
    %1112 = vmatprep.subr.mxu0 0.0
    %1113 = vmatpush1.msra.mxu0 0.0
    %1114 = vmatprep.subr.mxu0 0.0
    %1115 = vmatpush1.msra.mxu0 0.0
    %1116 = vmatprep.subr.mxu0 0.0
    %1117 = vmatpush1.msra.mxu0 0.0
    %1118 = vmatprep.subr.mxu0 0.0
    %1119 = vmatpush1.msra.mxu0 0.0
    %1120 = vmatprep.subr.mxu0 0.0
    %1121 = vmatpush1.msra.mxu0 0.0
    %1122 = vmatprep.mubr.f32.mxu0 0.0
    %1123 = vmatmul.mubr.f32.gmra.mrb[0].mxu0 %v1053
    %v1124 = vpop.f32.mrb[0].mxu0
    %v1125 = vadd.f32 0.0, %v1124
    %v1126 = vpop.f32.mrb[0].mxu0
    %1127 = vmatprep.mubr.f32.mxu0 0.0
    %1128 = vmatmul.mubr.f32.gmra.mrb[0].mxu0 %v1056
    %v1129 = vpop.f32.mrb[0].mxu0
    %v1130 = vadd.f32 0.0, %v1129
    %v1131 = vpop.f32.mrb[0].mxu0
    %1132 = vdwg.mxu0
    %1135 = vrot.lane.b32.xlu0 %v725, 8
    %v1136 = vpop.permute.xlu0 %1135
    %1137 = vrot.lane.b32.xlu0 %v730, 8
    %v1138 = vpop.permute.xlu0 %1137
    %1143 = vrot.lane.b32.xlu0 %v925, 16
    %v1144 = vpop.permute.xlu0 %1143
    %1145 = vrot.lane.b32.xlu0 %v930, 16
    %v1146 = vpop.permute.xlu0 %1145
    %1151 = vrot.lane.b32.xlu0 %v1125, 24
    %v1152 = vpop.permute.xlu0 %1151
    %1153 = vrot.lane.b32.xlu0 %v1130, 24
    %v1154 = vpop.permute.xlu0 %1153
    %v1157 = vsel %vm339, %v523, %v1136
    %v1158 = vsel %vm339, %v528, %v1138
    %v1159 = vsel %vm427, %v1157, %v1144
    %v1160 = vsel %vm427, %v1158, %v1146
    %vm1161 = vcmask 195584
    %v1162 = vsel %vm1161, %v1159, %v1152
    %v1163 = vsel %vm1161, %v1160, %v1154
    %v1164 = vld [vmem:[#allocation5] sm:$0xff]
    %v1165 = vld [vmem:[#allocation5 + $0x8] sm:$0xff]
    %v1166 = vld [vmem:[#allocation5 + $0x10] sm:$0xff]
    %v1167 = vld [vmem:[#allocation5 + $0x18] sm:$0xff]
    %v1169 = vsel %vm95, %v1162, 0
    %v1172 = vsel %vm95, %v1163, 0
    %1174 = vmatprep.subr.mxu0 0.0
    %1175 = vmatpush1.msra.mxu0 %v1164
    %1176 = vmatprep.subr.mxu0 0.0
    %1177 = vmatpush1.msra.mxu0 %v1165
    %1178 = vmatprep.subr.mxu0 0.0
    %1179 = vmatpush1.msra.mxu0 %v1166
    %1180 = vmatprep.subr.mxu0 0.0
    %1181 = vmatpush1.msra.mxu0 %v1167
    %1182 = vmatprep.subr.mxu0 0.0
    %1183 = vmatpush1.msra.mxu0 0.0
    %1184 = vmatprep.subr.mxu0 0.0
    %1185 = vmatpush1.msra.mxu0 0.0
    %1186 = vmatprep.subr.mxu0 0.0
    %1187 = vmatpush1.msra.mxu0 0.0
    %1188 = vmatprep.subr.mxu0 0.0
    %1189 = vmatpush1.msra.mxu0 0.0
    %1190 = vmatprep.subr.mxu0 0.0
    %1191 = vmatpush1.msra.mxu0 0.0
    %1192 = vmatprep.subr.mxu0 0.0
    %1193 = vmatpush1.msra.mxu0 0.0
    %1194 = vmatprep.subr.mxu0 0.0
    %1195 = vmatpush1.msra.mxu0 0.0
    %1196 = vmatprep.subr.mxu0 0.0
    %1197 = vmatpush1.msra.mxu0 0.0
    %1198 = vmatprep.subr.mxu0 0.0
    %1199 = vmatpush1.msra.mxu0 0.0
    %1200 = vmatprep.subr.mxu0 0.0
    %1201 = vmatpush1.msra.mxu0 0.0
    %1202 = vmatprep.subr.mxu0 0.0
    %1203 = vmatpush1.msra.mxu0 0.0
    %1204 = vmatprep.subr.mxu0 0.0
    %1205 = vmatpush1.msra.mxu0 0.0
    %1206 = vmatprep.subr.mxu0 0.0
    %1207 = vmatpush1.msra.mxu0 0.0
    %1208 = vmatprep.subr.mxu0 0.0
    %1209 = vmatpush1.msra.mxu0 0.0
    %1210 = vmatprep.subr.mxu0 0.0
    %1211 = vmatpush1.msra.mxu0 0.0
    %1212 = vmatprep.subr.mxu0 0.0
    %1213 = vmatpush1.msra.mxu0 0.0
    %1214 = vmatprep.subr.mxu0 0.0
    %1215 = vmatpush1.msra.mxu0 0.0
    %1216 = vmatprep.subr.mxu0 0.0
    %1217 = vmatpush1.msra.mxu0 0.0
    %1218 = vmatprep.subr.mxu0 0.0
    %1219 = vmatpush1.msra.mxu0 0.0
    %1220 = vmatprep.subr.mxu0 0.0
    %1221 = vmatpush1.msra.mxu0 0.0
    %1222 = vmatprep.subr.mxu0 0.0
    %1223 = vmatpush1.msra.mxu0 0.0
    %1224 = vmatprep.subr.mxu0 0.0
    %1225 = vmatpush1.msra.mxu0 0.0
    %1226 = vmatprep.subr.mxu0 0.0
    %1227 = vmatpush1.msra.mxu0 0.0
    %1228 = vmatprep.subr.mxu0 0.0
    %1229 = vmatpush1.msra.mxu0 0.0
    %1230 = vmatprep.subr.mxu0 0.0
    %1231 = vmatpush1.msra.mxu0 0.0
    %1232 = vmatprep.subr.mxu0 0.0
    %1233 = vmatpush1.msra.mxu0 0.0
    %1234 = vmatprep.subr.mxu0 0.0
    %1235 = vmatpush1.msra.mxu0 0.0
    %1236 = vmatprep.subr.mxu0 0.0
    %1237 = vmatpush1.msra.mxu0 0.0
    %1238 = vmatprep.mubr.f32.mxu0 0.0
    %1239 = vmatmul.mubr.f32.gmra.mrb[0].mxu0 %v1169
    %v1240 = vpop.f32.mrb[0].mxu0
    %v1241 = vadd.f32 0.0, %v1240
    %v1242 = vpop.f32.mrb[0].mxu0
    %1243 = vmatprep.mubr.f32.mxu0 0.0
    %1244 = vmatmul.mubr.f32.gmra.mrb[0].mxu0 %v1172
    %v1245 = vpop.f32.mrb[0].mxu0
    %v1246 = vadd.f32 0.0, %v1245
    %v1247 = vpop.f32.mrb[0].mxu0
    %1248 = vdwg.mxu0
    %v1249 = vld [vmem:[%s10] sm:$0x1]
    %v1250 = vld [vmem:[%s11] sm:$0x1]
    %v1251 = vsel %vm95, %v1241, 0.0
    %1252 = vadd.xlane.f32.xlu0 %v1251
    %v1253 = vpop.xlane.xlu0 %1252
    %v1254 = vsel %vm95, %v1246, 0.0
    %1255 = vadd.xlane.f32.xlu0 %v1254
    %v1256 = vpop.xlane.xlu0 %1255
    %v1257 = vrcp.pop 32.0
    %v1258 = vmul.f32 %v1253, %v1257
    %v1259 = vmul.f32 %v1256, %v1257
    %v1260 = vsub.f32 %v1241, %v1258
    %v1261 = vsub.f32 %v1246, %v1259
    %v1262 = vmul.f32 %v1260, %v1260
    %v1263 = vmul.f32 %v1261, %v1261
    %v1264 = vsel %vm95, %v1262, 0.0
    %1265 = vadd.xlane.f32.xlu0 %v1264
    %v1266 = vpop.xlane.xlu0 %1265
    %v1267 = vsel %vm95, %v1263, 0.0
    %1268 = vadd.xlane.f32.xlu0 %v1267
    %v1269 = vpop.xlane.xlu0 %1268
    %v1270 = vmul.f32 %v1266, %v1257
    %v1271 = vmul.f32 %v1269, %v1257
    %v1272 = vadd.f32 %v1270, 1e-05
    %v1273 = vadd.f32 %v1271, 1e-05
    %v1274 = vrsqrt.pop %v1272
    %v1275 = vrsqrt.pop %v1273
    %v1276 = vmul.f32 %v1260, %v1274
    %v1277 = vmul.f32 %v1261, %v1275
    %v1279 = vlaneseq
    %v1280 = vshrl.u32 %v1279, 7
    %v1281 = vsub.s32 0, %v1280
    %v1282 = vrot.slane %v1249, %v1281
    %v1284 = vmul.f32 %v1276, %v1282
    %v1285 = vmul.f32 %v1277, %v1282
    %v1287 = vlaneseq
    %v1288 = vshrl.u32 %v1287, 7
    %v1289 = vsub.s32 0, %v1288
    %v1290 = vrot.slane %v1250, %v1289
    %v1292 = vadd.f32 %v1284, %v1290
    %v1293 = vadd.f32 %v1285, %v1290
    %v1294 = vld [vmem:[#allocation7] sm:$0xff]
    %v1295 = vld [vmem:[#allocation7 + $0x8] sm:$0xff]
    %v1296 = vld [vmem:[#allocation7 + $0x10] sm:$0xff]
    %v1297 = vld [vmem:[#allocation7 + $0x18] sm:$0xff]
    %v1298 = vld [vmem:[%s7] sm:$0x1]
    %v1300 = vlaneseq
    %v1301 = vshrl.u32 %v1300, 7
    %v1302 = vsub.s32 0, %v1301
    %v1303 = vrot.slane %v1298, %v1302
    %v1306 = vsel %vm95, %v1292, 0
    %v1309 = vsel %vm95, %v1293, 0
    %1311 = vmatprep.subr.mxu0 0.0
    %1312 = vmatpush1.msra.mxu0 %v1294
    %1313 = vmatprep.subr.mxu0 0.0
    %1314 = vmatpush1.msra.mxu0 %v1295
    %1315 = vmatprep.subr.mxu0 0.0
    %1316 = vmatpush1.msra.mxu0 %v1296
    %1317 = vmatprep.subr.mxu0 0.0
    %1318 = vmatpush1.msra.mxu0 %v1297
    %1319 = vmatprep.subr.mxu0 0.0
    %1320 = vmatpush1.msra.mxu0 0.0
    %1321 = vmatprep.subr.mxu0 0.0
    %1322 = vmatpush1.msra.mxu0 0.0
    %1323 = vmatprep.subr.mxu0 0.0
    %1324 = vmatpush1.msra.mxu0 0.0
    %1325 = vmatprep.subr.mxu0 0.0
    %1326 = vmatpush1.msra.mxu0 0.0
    %1327 = vmatprep.subr.mxu0 0.0
    %1328 = vmatpush1.msra.mxu0 0.0
    %1329 = vmatprep.subr.mxu0 0.0
    %1330 = vmatpush1.msra.mxu0 0.0
    %1331 = vmatprep.subr.mxu0 0.0
    %1332 = vmatpush1.msra.mxu0 0.0
    %1333 = vmatprep.subr.mxu0 0.0
    %1334 = vmatpush1.msra.mxu0 0.0
    %1335 = vmatprep.subr.mxu0 0.0
    %1336 = vmatpush1.msra.mxu0 0.0
    %1337 = vmatprep.subr.mxu0 0.0
    %1338 = vmatpush1.msra.mxu0 0.0
    %1339 = vmatprep.subr.mxu0 0.0
    %1340 = vmatpush1.msra.mxu0 0.0
    %1341 = vmatprep.subr.mxu0 0.0
    %1342 = vmatpush1.msra.mxu0 0.0
    %1343 = vmatprep.subr.mxu0 0.0
    %1344 = vmatpush1.msra.mxu0 0.0
    %1345 = vmatprep.subr.mxu0 0.0
    %1346 = vmatpush1.msra.mxu0 0.0
    %1347 = vmatprep.subr.mxu0 0.0
    %1348 = vmatpush1.msra.mxu0 0.0
    %1349 = vmatprep.subr.mxu0 0.0
    %1350 = vmatpush1.msra.mxu0 0.0
    %1351 = vmatprep.subr.mxu0 0.0
    %1352 = vmatpush1.msra.mxu0 0.0
    %1353 = vmatprep.subr.mxu0 0.0
    %1354 = vmatpush1.msra.mxu0 0.0
    %1355 = vmatprep.subr.mxu0 0.0
    %1356 = vmatpush1.msra.mxu0 0.0
    %1357 = vmatprep.subr.mxu0 0.0
    %1358 = vmatpush1.msra.mxu0 0.0
    %1359 = vmatprep.subr.mxu0 0.0
    %1360 = vmatpush1.msra.mxu0 0.0
    %1361 = vmatprep.subr.mxu0 0.0
    %1362 = vmatpush1.msra.mxu0 0.0
    %1363 = vmatprep.subr.mxu0 0.0
    %1364 = vmatpush1.msra.mxu0 0.0
    %1365 = vmatprep.subr.mxu0 0.0
    %1366 = vmatpush1.msra.mxu0 0.0
    %1367 = vmatprep.subr.mxu0 0.0
    %1368 = vmatpush1.msra.mxu0 0.0
    %1369 = vmatprep.subr.mxu0 0.0
    %1370 = vmatpush1.msra.mxu0 0.0
    %1371 = vmatprep.subr.mxu0 0.0
    %1372 = vmatpush1.msra.mxu0 0.0
    %1373 = vmatprep.subr.mxu0 0.0
    %1374 = vmatpush1.msra.mxu0 0.0
    %1375 = vmatprep.mubr.f32.mxu0 0.0
    %1376 = vmatmul.mubr.f32.gmra.mrb[0].mxu0 %v1306
    %v1377 = vpop.f32.mrb[0].mxu0
    %v1378 = vadd.f32 %v1303, %v1377
    %v1379 = vpop.f32.mrb[0].mxu0
    %1380 = vmatprep.mubr.f32.mxu0 0.0
    %1381 = vmatmul.mubr.f32.gmra.mrb[0].mxu0 %v1309
    %v1382 = vpop.f32.mrb[0].mxu0
    %v1383 = vadd.f32 %v1303, %v1382
    %v1384 = vpop.f32.mrb[0].mxu0
    %1385 = vdwg.mxu0
    %v1386 = vmax.f32 %v1378, 0.0
    %v1387 = vmax.f32 %v1383, 0.0
    %v1388 = vld [vmem:[%s8] sm:$0xff]
    %v1389 = vld [vmem:[%s8 + $0x8] sm:$0xff]
    %v1390 = vld [vmem:[%s8 + $0x10] sm:$0xff]
    %v1391 = vld [vmem:[%s8 + $0x18] sm:$0xff]
    %v1392 = vld [vmem:[%s8 + $0x20] sm:$0xff]
    %v1393 = vld [vmem:[%s8 + $0x28] sm:$0xff]
    %v1394 = vld [vmem:[%s8 + $0x30] sm:$0xff]
    %v1395 = vld [vmem:[%s8 + $0x38] sm:$0xff]
    %v1396 = vld [vmem:[%s9] sm:$0x1]
    %v1398 = vlaneseq
    %v1399 = vshrl.u32 %v1398, 7
    %v1400 = vsub.s32 0, %v1399
    %v1401 = vrot.slane %v1396, %v1400
    %vm1403 = vcmask 523264
    %v1405 = vsel %vm1403, %v1386, 0
    %v1408 = vsel %vm1403, %v1387, 0
    %1410 = vmatprep.subr.mxu0 0.0
    %1411 = vmatpush1.msra.mxu0 %v1388
    %1412 = vmatprep.subr.mxu0 0.0
    %1413 = vmatpush1.msra.mxu0 %v1389
    %1414 = vmatprep.subr.mxu0 0.0
    %1415 = vmatpush1.msra.mxu0 %v1390
    %1416 = vmatprep.subr.mxu0 0.0
    %1417 = vmatpush1.msra.mxu0 %v1391
    %1418 = vmatprep.subr.mxu0 0.0
    %1419 = vmatpush1.msra.mxu0 %v1392
    %1420 = vmatprep.subr.mxu0 0.0
    %1421 = vmatpush1.msra.mxu0 %v1393
    %1422 = vmatprep.subr.mxu0 0.0
    %1423 = vmatpush1.msra.mxu0 %v1394
    %1424 = vmatprep.subr.mxu0 0.0
    %1425 = vmatpush1.msra.mxu0 %v1395
    %1426 = vmatprep.subr.mxu0 0.0
    %1427 = vmatpush1.msra.mxu0 0.0
    %1428 = vmatprep.subr.mxu0 0.0
    %1429 = vmatpush1.msra.mxu0 0.0
    %1430 = vmatprep.subr.mxu0 0.0
    %1431 = vmatpush1.msra.mxu0 0.0
    %1432 = vmatprep.subr.mxu0 0.0
    %1433 = vmatpush1.msra.mxu0 0.0
    %1434 = vmatprep.subr.mxu0 0.0
    %1435 = vmatpush1.msra.mxu0 0.0
    %1436 = vmatprep.subr.mxu0 0.0
    %1437 = vmatpush1.msra.mxu0 0.0
    %1438 = vmatprep.subr.mxu0 0.0
    %1439 = vmatpush1.msra.mxu0 0.0
    %1440 = vmatprep.subr.mxu0 0.0
    %1441 = vmatpush1.msra.mxu0 0.0
    %1442 = vmatprep.subr.mxu0 0.0
    %1443 = vmatpush1.msra.mxu0 0.0
    %1444 = vmatprep.subr.mxu0 0.0
    %1445 = vmatpush1.msra.mxu0 0.0
    %1446 = vmatprep.subr.mxu0 0.0
    %1447 = vmatpush1.msra.mxu0 0.0
    %1448 = vmatprep.subr.mxu0 0.0
    %1449 = vmatpush1.msra.mxu0 0.0
    %1450 = vmatprep.subr.mxu0 0.0
    %1451 = vmatpush1.msra.mxu0 0.0
    %1452 = vmatprep.subr.mxu0 0.0
    %1453 = vmatpush1.msra.mxu0 0.0
    %1454 = vmatprep.subr.mxu0 0.0
    %1455 = vmatpush1.msra.mxu0 0.0
    %1456 = vmatprep.subr.mxu0 0.0
    %1457 = vmatpush1.msra.mxu0 0.0
    %1458 = vmatprep.subr.mxu0 0.0
    %1459 = vmatpush1.msra.mxu0 0.0
    %1460 = vmatprep.subr.mxu0 0.0
    %1461 = vmatpush1.msra.mxu0 0.0
    %1462 = vmatprep.subr.mxu0 0.0
    %1463 = vmatpush1.msra.mxu0 0.0
    %1464 = vmatprep.subr.mxu0 0.0
    %1465 = vmatpush1.msra.mxu0 0.0
    %1466 = vmatprep.subr.mxu0 0.0
    %1467 = vmatpush1.msra.mxu0 0.0
    %1468 = vmatprep.subr.mxu0 0.0
    %1469 = vmatpush1.msra.mxu0 0.0
    %1470 = vmatprep.subr.mxu0 0.0
    %1471 = vmatpush1.msra.mxu0 0.0
    %1472 = vmatprep.subr.mxu0 0.0
    %1473 = vmatpush1.msra.mxu0 0.0
    %1474 = vmatprep.mubr.f32.mxu0 0.0
    %1475 = vmatmul.mubr.f32.gmra.mrb[0].mxu0 %v1405
    %v1476 = vpop.f32.mrb[0].mxu0
    %v1477 = vadd.f32 %v1401, %v1476
    %v1478 = vpop.f32.mrb[0].mxu0
    %1479 = vmatprep.mubr.f32.mxu0 0.0
    %1480 = vmatmul.mubr.f32.gmra.mrb[0].mxu0 %v1408
    %v1481 = vpop.f32.mrb[0].mxu0
    %v1482 = vadd.f32 %v1401, %v1481
    %v1483 = vpop.f32.mrb[0].mxu0
    %1484 = vdwg.mxu0
    %v1485 = vld [vmem:[%s12] sm:$0x1]
    %v1486 = vld [vmem:[%s13] sm:$0x1]
    %v1487 = vsel %vm95, %v1477, 0.0
    %1488 = vadd.xlane.f32.xlu0 %v1487
    %v1489 = vpop.xlane.xlu0 %1488
    %v1490 = vsel %vm95, %v1482, 0.0
    %1491 = vadd.xlane.f32.xlu0 %v1490
    %v1492 = vpop.xlane.xlu0 %1491
    %v1493 = vmul.f32 %v1489, %v1257
    %v1494 = vmul.f32 %v1492, %v1257
    %v1495 = vsub.f32 %v1477, %v1493
    %v1496 = vsub.f32 %v1482, %v1494
    %v1497 = vmul.f32 %v1495, %v1495
    %v1498 = vmul.f32 %v1496, %v1496
    %v1499 = vsel %vm95, %v1497, 0.0
    %1500 = vadd.xlane.f32.xlu0 %v1499
    %v1501 = vpop.xlane.xlu0 %1500
    %v1502 = vsel %vm95, %v1498, 0.0
    %1503 = vadd.xlane.f32.xlu0 %v1502
    %v1504 = vpop.xlane.xlu0 %1503
    %v1505 = vmul.f32 %v1501, %v1257
    %v1506 = vmul.f32 %v1504, %v1257
    %v1507 = vadd.f32 %v1505, 1e-05
    %v1508 = vadd.f32 %v1506, 1e-05
    %v1509 = vrsqrt.pop %v1507
    %v1510 = vrsqrt.pop %v1508
    %v1511 = vmul.f32 %v1495, %v1509
    %v1512 = vmul.f32 %v1496, %v1510
    %v1514 = vlaneseq
    %v1515 = vshrl.u32 %v1514, 7
    %v1516 = vsub.s32 0, %v1515
    %v1517 = vrot.slane %v1485, %v1516
    %v1519 = vmul.f32 %v1511, %v1517
    %v1520 = vmul.f32 %v1512, %v1517
    %v1522 = vlaneseq
    %v1523 = vshrl.u32 %v1522, 7
    %v1524 = vsub.s32 0, %v1523
    %v1525 = vrot.slane %v1486, %v1524
    %v1527 = vadd.f32 %v1519, %v1525
    %v1528 = vadd.f32 %v1520, %v1525
    %1529 = vst.msk [vmem:[#allocation8] sm:$0xff] %vm95, %v1527
    %1530 = vst.msk [vmem:[#allocation8 + $0x8] sm:$0xff] %vm95, %v1528
    // Predicated region
    $region70: #{tpu_custom_call.1} parent=1 // pred_check
      _
    $region71: #{tpu_custom_call.1} parent=1 // pred_check_branch
      %1532 = sbr.rel (0) target = $region73
    $region72: #{tpu_custom_call.1} parent=1 // pred_region
      %s1534 = ssub.s32 256, 256
      %1535 = vsyncadd [#allocation4], %s1534
      %s1536 = sshll.u32 [#allocation8], 4
      %s1537 = int_to_ptr.vmem [resolvable:$true] %s1536
      %1542 = dma.vmem_to_hbm [thread:$0]  %s1537, 256, %s14, [#allocation4], 128, 128, 8
    $region73: #{tpu_custom_call.1} parent=1 // pred_fallthru
      _
    // Predicated region
    $region74: #{tpu_custom_call.1} parent=1 // pred_check
      _
    $region75: #{tpu_custom_call.1} parent=1 // pred_check_branch
      %1544 = sbr.rel (0) target = $region77
    $region76: #{tpu_custom_call.1} parent=1 // pred_region
      %1545 = dma.done [#allocation4], 256
    $region77: #{tpu_custom_call.1} parent=1 // pred_fallthru
      _
    %1546 = vsyncpa [#allocation3], 1
    %1547 = vsyncpa [#allocation6], 1
    %1548 = vsyncpa [#allocation4], 1

</llo_original>
